<compile_context>
chip_gen: v6e
topology: v6e:2x2x1
jax: 0.10.0
libtpu: 0.0.40
codegen_flags: <defaults>
</compile_context>

<pallas_src>
import functools
import math

import jax
import jax.numpy as jnp
from jax.experimental import pallas as pl
from jax.experimental.pallas import tpu as pltpu


# ----------------------------------------------------------------------------
# tile selection helpers
# ----------------------------------------------------------------------------
def _pick_tile(n, candidates):
    """Largest candidate that evenly divides n; full dim if small; else error."""
    for c in candidates:
        if c <= n and n % c == 0:
            return c
    if n <= max(candidates):
        return n
    raise ValueError(
        f"dimension {n} is not divisible by any tile candidate {candidates}; "
        "pad it (e.g. vocab or B*S) to a multiple of 128")


_TM_CANDS = (512, 256, 128, 64, 32, 16, 8)
_TN_CANDS = (1024, 768, 512, 384, 256, 128)
# tk <= 512 keeps the double-buffered bf16 weight tile <= ~2 MiB (v5e guidance)
_TK_CANDS = (512, 384, 256, 128)


def _pick_linear_tiles(M, N, K, fused_ln, has_res):
    tm = _pick_tile(M, _TM_CANDS)
    tn = _pick_tile(N, _TN_CANDS)
    tk = K if fused_ln else _pick_tile(K, _TK_CANDS)

    def vmem_bytes(tm_, tn_):
        b = 2 * 2 * (tm_ * tk + tk * tn_ + tm_ * tn_)   # double-buffered bf16 x/w/out
        if has_res:
            b += 2 * 2 * tm_ * tn_
        b += 4 * tm_ * tn_                               # f32 accumulator scratch
        return b

    def shrink(val, full, cands):
        smaller = tuple(c for c in cands if c < val)
        return _pick_tile(full, smaller) if smaller else val

    # Stay well under scoped-VMEM defaults (16/32 MiB) and v7x's 64 MiB physical.
    while vmem_bytes(tm, tn) > (24 << 20):
        if tn > 128:
            new = shrink(tn, N, _TN_CANDS)
            if new == tn:
                break
            tn = new
        elif tm > 8:
            new = shrink(tm, M, _TM_CANDS)
            if new == tm:
                break
            tm = new
        else:
            break
    return tm, tn, tk


# ----------------------------------------------------------------------------
# Pallas kernels
# ----------------------------------------------------------------------------
def _linear_kernel(*refs, act, has_residual, fused_ln, ln_eps, multi_k):
    """y = act(LN?(x) @ W + b) (+ residual) for one (tm, tn) output tile."""
    refs = list(refs)
    x_ref = refs.pop(0)
    w_ref = refs.pop(0)
    b_ref = refs.pop(0)
    g_ref = refs.pop(0) if fused_ln else None
    bt_ref = refs.pop(0) if fused_ln else None
    res_ref = refs.pop(0) if has_residual else None
    o_ref = refs.pop(0)
    acc_ref = refs.pop(0) if multi_k else None

    def epilogue(acc):
        y = acc + b_ref[...].astype(jnp.float32)
        if act == "gelu":
            # exact (erf) GELU, matching torch.nn.functional.gelu default
            y = 0.5 * y * (1.0 + jax.lax.erf(y * (1.0 / math.sqrt(2.0))))
        if has_residual:
            y = y + res_ref[...].astype(jnp.float32)
        o_ref[...] = y.astype(o_ref.dtype)

    if fused_ln:
        # LayerNorm prologue over the full K row (tk == K), stats in f32.
        xf = x_ref[...].astype(jnp.float32)
        mu = jnp.mean(xf, axis=-1, keepdims=True)
        var = jnp.mean(jnp.square(xf - mu), axis=-1, keepdims=True)
        xn = (xf - mu) * jax.lax.rsqrt(var + ln_eps)
        xn = xn * g_ref[...].astype(jnp.float32) + bt_ref[...].astype(jnp.float32)
        x = xn.astype(w_ref.dtype)           # bf16 into the MXU, f32 accumulation
    else:
        x = x_ref[...]

    if multi_k:
        k = pl.program_id(2)

        @pl.when(k == 0)
        def _():
            acc_ref[...] = jnp.zeros_like(acc_ref)

        acc_ref[...] += jnp.dot(x, w_ref[...], preferred_element_type=jnp.float32)

        @pl.when(k == pl.num_programs(2) - 1)
        def _():
            epilogue(acc_ref[...])
    else:
        epilogue(jnp.dot(x, w_ref[...], preferred_element_type=jnp.float32))


def _flash_attn_kernel(qi_ref, ki_ref, q_ref, k_ref, v_ref, o_ref,
                       m_sc, l_sc, acc_sc):
    """Causal flash attention step for one (b, h, flat lower-triangular index)."""
    t = pl.program_id(2)
    qi = qi_ref[t]
    ki = ki_ref[t]
    tq = q_ref.shape[1]
    tk = k_ref.shape[1]

    @pl.when(ki == 0)
    def _():
        m_sc[...] = jnp.full_like(m_sc, -jnp.inf)
        l_sc[...] = jnp.zeros_like(l_sc)
        acc_sc[...] = jnp.zeros_like(acc_sc)

    # bf16 Q/K straight into the MXU (f32 accumulation). The 1/sqrt(Dh) scale is
    # folded into the Q projection weights at init, so no per-kv-tile rescale/cast.
    s = jax.lax.dot_general(q_ref[0], k_ref[0], (((1,), (1,)), ((), ())),
                            preferred_element_type=jnp.float32)       # (tq, tk)

    def online_update(scores):
        m_prev = m_sc[...]
        m_new = jnp.maximum(m_prev, jnp.max(scores, axis=-1, keepdims=True))
        alpha = jnp.exp(m_prev - m_new)
        p = jnp.exp(scores - m_new)
        l_sc[...] = alpha * l_sc[...] + jnp.sum(p, axis=-1, keepdims=True)
        acc_sc[...] = alpha * acc_sc[...] + jnp.dot(
            p.astype(v_ref.dtype), v_ref[0], preferred_element_type=jnp.float32)
        m_sc[...] = m_new

    @pl.when(ki < qi)           # fully-unmasked KV tile (strictly below the diagonal)
    def _():
        online_update(s)

    @pl.when(ki == qi)          # diagonal tile: mask + finalize (last kv step of this q tile)
    def _():
        rows = jax.lax.broadcasted_iota(jnp.int32, (tq, tk), 0)
        cols = jax.lax.broadcasted_iota(jnp.int32, (tq, tk), 1)
        online_update(jnp.where(cols <= rows, s, -jnp.inf))
        o_ref[0] = (acc_sc[...] *
                    pl.reciprocal(l_sc[...], approx=True)).astype(o_ref.dtype)


# ----------------------------------------------------------------------------
# Pallas wrappers
# ----------------------------------------------------------------------------
def pallas_linear(x, w, b, act=None, residual=None, ln=None, out_dtype=None):
    """y = act(LN?(x) @ W + b) (+ residual).  x:(M,K), w:(K,N), ln=(gamma,beta,eps)."""
    M, K = x.shape
    Kw, N = w.shape
    assert K == Kw
    out_dtype = out_dtype or x.dtype
    fused_ln = ln is not None
    has_res = residual is not None

    tm, tn, tk = _pick_linear_tiles(M, N, K, fused_ln, has_res)
    multi_k = tk < K
    if fused_ln and multi_k:
        raise ValueError("fused LayerNorm requires the full K dimension in one block")

    args = [x, w, b.reshape(1, N).astype(jnp.float32)]
    if multi_k:
        grid = (M // tm, N // tn, K // tk)
        in_specs = [
            pl.BlockSpec((tm, tk), lambda i, j, k: (i, k)),
            pl.BlockSpec((tk, tn), lambda i, j, k: (k, j)),
            pl.BlockSpec((1, tn), lambda i, j, k: (0, j)),
        ]
        res_spec = pl.BlockSpec((tm, tn), lambda i, j, k: (i, j))
        out_spec = pl.BlockSpec((tm, tn), lambda i, j, k: (i, j))
        scratch = [pltpu.VMEM((tm, tn), jnp.float32)]
        dims = ("parallel", "parallel", "arbitrary")
    else:
        grid = (M // tm, N // tn)
        in_specs = [
            pl.BlockSpec((tm, K), lambda i, j: (i, 0)),
            pl.BlockSpec((K, tn), lambda i, j: (0, j)),
            pl.BlockSpec((1, tn), lambda i, j: (0, j)),
        ]
        res_spec = pl.BlockSpec((tm, tn), lambda i, j: (i, j))
        out_spec = pl.BlockSpec((tm, tn), lambda i, j: (i, j))
        scratch = []
        dims = ("parallel", "parallel")

    ln_eps = 0.0
    if fused_ln:
        gamma, beta, ln_eps = ln
        in_specs.append(pl.BlockSpec((1, K), lambda i, j: (0, 0)))
        in_specs.append(pl.BlockSpec((1, K), lambda i, j: (0, 0)))
        args.append(gamma.reshape(1, K).astype(jnp.float32))
        args.append(beta.reshape(1, K).astype(jnp.float32))
    if has_res:
        in_specs.append(res_spec)
        args.append(residual)

    kern = functools.partial(_linear_kernel, act=act, has_residual=has_res,
                             fused_ln=fused_ln, ln_eps=float(ln_eps),
                             multi_k=multi_k)
    return pl.pallas_call(
        kern,
        out_shape=jax.ShapeDtypeStruct((M, N), out_dtype),
        grid=grid,
        in_specs=in_specs,
        out_specs=out_spec,
        scratch_shapes=scratch,
        compiler_params=pltpu.CompilerParams(
            dimension_semantics=dims,
            vmem_limit_bytes=32 * 1024 * 1024),
    )(*args)


def pallas_flash_attention(qkv, num_heads):
    """qkv: (B, S, 3D) with per-head interleaved layout [q_h | k_h | v_h] -> ctx (B, S, D)."""
    B, S, threeD = qkv.shape
    D = threeD // 3
    H = num_heads
    Dh = D // H
    # TODO(synk): for head_dim < 128 (real GPT Dh=64), pack 2 heads per block for
    # lane-dense tiles; the demo config uses Dh=128 so blocks are already lane-dense.

    tile = _pick_tile(S, (256, 128, 64, 32, 16, 8))   # tq == tkv, 128-256 sweet spot
    nq = S // tile

    # Lower-triangular (qi, ki) enumeration flattened to a 1-D grid: KV tiles above
    # the causal diagonal are never stepped or DMA'd (halves attention work at long S).
    qi_list, ki_list = [], []
    for qi in range(nq):
        for ki in range(qi + 1):
            qi_list.append(qi)
            ki_list.append(ki)
    qi_tab = jnp.asarray(qi_list, jnp.int32)
    ki_tab = jnp.asarray(ki_list, jnp.int32)
    steps = len(qi_list)

    grid_spec = pltpu.PrefetchScalarGridSpec(
        num_scalar_prefetch=2,
        grid=(B, H, steps),
        in_specs=[
            pl.BlockSpec((1, tile, Dh), lambda b, h, t, qi, ki: (b, qi[t], 3 * h)),
            pl.BlockSpec((1, tile, Dh), lambda b, h, t, qi, ki: (b, ki[t], 3 * h + 1)),
            pl.BlockSpec((1, tile, Dh), lambda b, h, t, qi, ki: (b, ki[t], 3 * h + 2)),
        ],
        out_specs=pl.BlockSpec((1, tile, Dh), lambda b, h, t, qi, ki: (b, qi[t], h)),
        scratch_shapes=[
            pltpu.VMEM((tile, 1), jnp.float32),    # running max
            pltpu.VMEM((tile, 1), jnp.float32),    # running sum
            pltpu.VMEM((tile, Dh), jnp.float32),   # output accumulator
        ],
    )
    return pl.pallas_call(
        _flash_attn_kernel,
        out_shape=jax.ShapeDtypeStruct((B, S, D), qkv.dtype),
        grid_spec=grid_spec,
        compiler_params=pltpu.CompilerParams(
            dimension_semantics=("parallel", "parallel", "arbitrary")),
    )(qi_tab, ki_tab, qkv, qkv, qkv)


# ----------------------------------------------------------------------------
# Model: parameter init + forward (glue in plain JAX, compute in Pallas)
# ----------------------------------------------------------------------------
def init_params(key, *, vocab_size, max_pos, dim, num_heads, depth, mlp_ratio):
    head_dim = dim // num_heads
    scale = 1.0 / math.sqrt(head_dim)
    keys = jax.random.split(key, 4 + depth)

    def winit(k, shape):
        return 0.02 * jax.random.normal(k, shape, dtype=jnp.float32)

    wte = winit(keys[0], (vocab_size, dim)).at[0].set(0.0)   # padding_idx=0 -> zero row
    params = {
        "wte": wte.astype(jnp.bfloat16),
        # Tied LM head, pre-transposed once to (D, V): avoids per-tile in-kernel transposes.
        "head_w": wte.T.astype(jnp.bfloat16),
        "wpe": winit(keys[1], (max_pos, dim)).astype(jnp.bfloat16),
        "head_b": jnp.zeros((vocab_size,), jnp.float32),
        "ln_f_g": jnp.ones((dim,), jnp.float32),
        "ln_f_b": jnp.zeros((dim,), jnp.float32),
    }

    blocks = []
    for d in range(depth):
        bk = jax.random.split(keys[4 + d], 4)
        # Per-head interleaved QKV layout [q_h | k_h | v_h] (matches torch view+chunk).
        # Fold the attention 1/sqrt(Dh) scale into the Q projection columns (free at runtime).
        w_qkv = winit(bk[0], (dim, 3 * dim)).reshape(dim, num_heads, 3, head_dim)
        w_qkv = w_qkv.at[:, :, 0, :].multiply(scale)
        w_qkv = w_qkv.reshape(dim, 3 * dim).astype(jnp.bfloat16)
        b_qkv = jnp.zeros((3 * dim,), jnp.float32)  # Q-bias scale fold is a no-op on zeros
        blocks.append({
            "ln1_g": jnp.ones((dim,), jnp.float32),
            "ln1_b": jnp.zeros((dim,), jnp.float32),
            "ln2_g": jnp.ones((dim,), jnp.float32),
            "ln2_b": jnp.zeros((dim,), jnp.float32),
            "w_qkv": w_qkv,
            "b_qkv": b_qkv,
            "w_proj": winit(bk[1], (dim, dim)).astype(jnp.bfloat16),
            "b_proj": jnp.zeros((dim,), jnp.float32),
            "w_fc1": winit(bk[2], (dim, mlp_ratio * dim)).astype(jnp.bfloat16),
            "b_fc1": jnp.zeros((mlp_ratio * dim,), jnp.float32),
            "w_fc2": winit(bk[3], (mlp_ratio * dim, dim)).astype(jnp.bfloat16),
            "b_fc2": jnp.zeros((dim,), jnp.float32),
        })
    params["blocks"] = blocks
    return params


def gpt_forward(params, input_ids, *, num_heads):
    B, S = input_ids.shape
    D = params["wte"].shape[1]

    # --- GPTEmbedding (gather kept as JAX glue; dropout = identity) ---
    pos_ids = jnp.arange(S, dtype=jnp.int32)
    x = params["wte"][input_ids] + params["wpe"][pos_ids][None, :, :]   # (B,S,D) bf16
    xf = x.reshape(B * S, D)

    for blk in params["blocks"]:
        # --- GPTSelfAttention: LN1 fused into QKV prologue, residual fused into proj ---
        # (block LayerNorms use eps=1e-6, matching the GPTBlock reference)
        qkv = pallas_linear(xf, blk["w_qkv"], blk["b_qkv"],
                            ln=(blk["ln1_g"], blk["ln1_b"], 1e-6))       # (B*S, 3D)
        ctx = pallas_flash_attention(qkv.reshape(B, S, 3 * D), num_heads)  # (B,S,D)
        xf = pallas_linear(ctx.reshape(B * S, D), blk["w_proj"], blk["b_proj"],
                           residual=xf)

        # --- GPTMLP: LN2 fused into FC1 prologue, residual fused into FC2 ---
        h = pallas_linear(xf, blk["w_fc1"], blk["b_fc1"], act="gelu",
                          ln=(blk["ln2_g"], blk["ln2_b"], 1e-6))
        xf = pallas_linear(h, blk["w_fc2"], blk["b_fc2"], residual=xf)

    # --- final LayerNorm (eps=1e-5) fused into the tied LM head; bf16 logits ---
    logits = pallas_linear(xf, params["head_w"], params["head_b"],
                           ln=(params["ln_f_g"], params["ln_f_b"], 1e-5),
                           out_dtype=jnp.bfloat16)
    return logits.reshape(B, S, -1)


# ----------------------------------------------------------------------------
if __name__ == "__main__":
    # Small but lane-dense config (original: vocab=50304, dim=768, heads=12, S=1024).
    VOCAB = 512
    MAX_POS = 128
    DIM = 256
    NUM_HEADS = 2     # head_dim = 128 -> lane-dense attention tiles
    DEPTH = 2
    MLP_RATIO = 4
    B, S = 2, 128

    key = jax.random.PRNGKey(0)
    pkey, ikey = jax.random.split(key)
    params = init_params(
        pkey, vocab_size=VOCAB, max_pos=MAX_POS, dim=DIM,
        num_heads=NUM_HEADS, depth=DEPTH, mlp_ratio=MLP_RATIO)
    input_ids = jax.random.randint(ikey, (B, S), 0, VOCAB, dtype=jnp.int32)

    logits = gpt_forward(params, input_ids, num_heads=NUM_HEADS)
    jax.block_until_ready(logits)
    assert logits.shape == (B, S, VOCAB), logits.shape
    assert bool(jnp.isfinite(logits.astype(jnp.float32)).all()), "non-finite logits"
    # TODO(synk): dropout layers are identity (inference mode); attention_mask path unused (None).
    print("KERNEL_OK")
</pallas_src>

<mosaic_0001>
module attributes {stable_mosaic.version = 11 : i64} {
  func.func @_linear_kernel(%arg0: i32, %arg1: i32, %arg2: memref<256x256xbf16, #tpu.memory_space<vmem>>, %arg3: memref<256x768xbf16, #tpu.memory_space<vmem>>, %arg4: memref<1x768xf32, #tpu.memory_space<vmem>>, %arg5: memref<1x256xf32, #tpu.memory_space<vmem>>, %arg6: memref<1x256xf32, #tpu.memory_space<vmem>>, %arg7: memref<256x768xbf16, #tpu.memory_space<vmem>>) attributes {dimension_semantics = [#tpu.dimension_semantics<parallel>, #tpu.dimension_semantics<parallel>], iteration_bounds = array<i64: 1, 1>, scalar_prefetch = 0 : i64, scratch_operands = 0 : i64, tpu.core_type = #tpu.core_type<tc>, window_params = [{transform_indices = @transform_0, window_bounds = array<i64: 256, 256>}, {transform_indices = @transform_1, window_bounds = array<i64: 256, 768>}, {transform_indices = @transform_2, window_bounds = array<i64: 1, 768>}, {pipeline_mode = #tpu.pipeline_mode<synchronous>, transform_indices = @transform_3, window_bounds = array<i64: 1, 256>}, {pipeline_mode = #tpu.pipeline_mode<synchronous>, transform_indices = @transform_4, window_bounds = array<i64: 1, 256>}, {transform_indices = @transform_5, window_bounds = array<i64: 256, 768>}]} {
    %c0 = arith.constant 0 : index
    %c0_0 = arith.constant 0 : index
    %0 = vector.load %arg2[%c0, %c0_0] : memref<256x256xbf16, #tpu.memory_space<vmem>>, vector<256x256xbf16>
    %1 = arith.extf %0 : vector<256x256xbf16> to vector<256x256xf32>
    %cst = arith.constant dense<0.000000e+00> : vector<256xf32>
    %2 = vector.multi_reduction <add>, %1, %cst [1] : vector<256x256xf32> to vector<256xf32>
    %3 = vector.shape_cast %2 : vector<256xf32> to vector<256x1xf32>
    %cst_1 = arith.constant 2.560000e+02 : f32
    %4 = vector.broadcast %cst_1 : f32 to vector<256x1xf32>
    %5 = arith.divf %3, %4 : vector<256x1xf32>
    %6 = vector.broadcast %5 : vector<256x1xf32> to vector<256x256xf32>
    %7 = arith.subf %1, %6 : vector<256x256xf32>
    %8 = arith.mulf %7, %7 : vector<256x256xf32>
    %cst_2 = arith.constant dense<0.000000e+00> : vector<256xf32>
    %9 = vector.multi_reduction <add>, %8, %cst_2 [1] : vector<256x256xf32> to vector<256xf32>
    %10 = vector.shape_cast %9 : vector<256xf32> to vector<256x1xf32>
    %cst_3 = arith.constant 2.560000e+02 : f32
    %11 = vector.broadcast %cst_3 : f32 to vector<256x1xf32>
    %12 = arith.divf %10, %11 : vector<256x1xf32>
    %13 = vector.broadcast %5 : vector<256x1xf32> to vector<256x256xf32>
    %14 = arith.subf %1, %13 : vector<256x256xf32>
    %cst_4 = arith.constant 9.99999997E-7 : f32
    %15 = vector.broadcast %cst_4 : f32 to vector<256x1xf32>
    %16 = arith.addf %12, %15 : vector<256x1xf32>
    %17 = math.rsqrt %16 : vector<256x1xf32>
    %18 = vector.broadcast %17 : vector<256x1xf32> to vector<256x256xf32>
    %19 = arith.mulf %14, %18 : vector<256x256xf32>
    %c0_5 = arith.constant 0 : index
    %c0_6 = arith.constant 0 : index
    %20 = vector.load %arg5[%c0_5, %c0_6] : memref<1x256xf32, #tpu.memory_space<vmem>>, vector<1x256xf32>
    %21 = vector.broadcast %20 : vector<1x256xf32> to vector<256x256xf32>
    %22 = arith.mulf %19, %21 : vector<256x256xf32>
    %c0_7 = arith.constant 0 : index
    %c0_8 = arith.constant 0 : index
    %23 = vector.load %arg6[%c0_7, %c0_8] : memref<1x256xf32, #tpu.memory_space<vmem>>, vector<1x256xf32>
    %24 = vector.broadcast %23 : vector<1x256xf32> to vector<256x256xf32>
    %25 = arith.addf %22, %24 : vector<256x256xf32>
    %26 = arith.truncf %25 : vector<256x256xf32> to vector<256x256xbf16>
    %c0_9 = arith.constant 0 : index
    %c0_10 = arith.constant 0 : index
    %27 = vector.load %arg3[%c0_9, %c0_10] : memref<256x768xbf16, #tpu.memory_space<vmem>>, vector<256x768xbf16>
    %cst_11 = arith.constant dense<0.000000e+00> : vector<256x768xf32>
    %28 = tpu.matmul %26, %27, %cst_11 {dimension_numbers = #tpu.dot_dimension_numbers<[1], [0], [0], [1], [0, 0, 1, 1], [], []>} : vector<256x256xbf16>, vector<256x768xbf16>, vector<256x768xf32> -> vector<256x768xf32>
    %c0_12 = arith.constant 0 : index
    %c0_13 = arith.constant 0 : index
    %29 = vector.load %arg4[%c0_12, %c0_13] : memref<1x768xf32, #tpu.memory_space<vmem>>, vector<1x768xf32>
    %30 = vector.broadcast %29 : vector<1x768xf32> to vector<256x768xf32>
    %31 = arith.addf %28, %30 : vector<256x768xf32>
    %32 = arith.truncf %31 : vector<256x768xf32> to vector<256x768xbf16>
    %c0_14 = arith.constant 0 : index
    %c0_15 = arith.constant 0 : index
    %33 = vector.load %arg7[%c0_14, %c0_15] : memref<256x768xbf16, #tpu.memory_space<vmem>>, vector<256x768xbf16>
    tpu.vector_store %arg7[%c0_14, %c0_15], %32 {strides = array<i32>} : memref<256x768xbf16, #tpu.memory_space<vmem>>, vector<256x768xbf16>,
    return
  }
  func.func @transform_0(%arg0: i32, %arg1: i32) -> (i32, i32) {
    %c0_i32 = arith.constant 0 : i32
    %c0_i32_0 = arith.constant 0 : i32
    return %arg0, %c0_i32 : i32, i32
  }
  func.func @transform_1(%arg0: i32, %arg1: i32) -> (i32, i32) {
    %c0_i32 = arith.constant 0 : i32
    %c0_i32_0 = arith.constant 0 : i32
    return %c0_i32, %arg1 : i32, i32
  }
  func.func @transform_2(%arg0: i32, %arg1: i32) -> (i32, i32) {
    %c0_i32 = arith.constant 0 : i32
    %c0_i32_0 = arith.constant 0 : i32
    return %c0_i32, %arg1 : i32, i32
  }
  func.func @transform_3(%arg0: i32, %arg1: i32) -> (i32, i32) {
    %c0_i32 = arith.constant 0 : i32
    %c0_i32_0 = arith.constant 0 : i32
    %c0_i32_1 = arith.constant 0 : i32
    return %c0_i32, %c0_i32_0 : i32, i32
  }
  func.func @transform_4(%arg0: i32, %arg1: i32) -> (i32, i32) {
    %c0_i32 = arith.constant 0 : i32
    %c0_i32_0 = arith.constant 0 : i32
    %c0_i32_1 = arith.constant 0 : i32
    return %c0_i32, %c0_i32_0 : i32, i32
  }
  func.func @transform_5(%arg0: i32, %arg1: i32) -> (i32, i32) {
    %c0_i32 = arith.constant 0 : i32
    return %arg0, %arg1 : i32, i32
  }
}

</mosaic_0001>

<llo_original>
// kernel: tpu_custom_call.1
$region0: #{tpu_custom_call.1}
  #allocation0 [shape = 'u32[]', space=smem, size = 0x4, offset = 0x4, fixed_abs, tag = 'smem constant byte address 0x4 - core index']
  #allocation1 [shape = 'u32[144,128]{1,0:T(1,128)}', space=vmem, size = 0x12000, scoped, tag = 'internal scratch']
  %s0 = inlined_call_operand.hbm [shape: bf16[256,256], index: 0, kind: input, shape index: {}]
  %s1 = inlined_call_operand.hbm [shape: bf16[256,768], index: 1, kind: input, shape index: {}]
  %s2 = inlined_call_operand.hbm [shape: f32[1,768], index: 2, kind: input, shape index: {}]
  %s3 = inlined_call_operand.vmem [shape: f32[1,256], index: 3, kind: input, shape index: {}]
  %s4 = inlined_call_operand.vmem [shape: f32[1,256], index: 4, kind: input, shape index: {}]
  %s5 = inlined_call_operand.hbm [shape: bf16[256,768], index: 5, kind: output, shape index: {}]
  %s6 = sld [smem:[#allocation0]]
  $region42: #{tpu_custom_call.1} parent=0
    _
  %s8 = ssub.s32 1, %s6
  %s9 = scalar_select 0, %s8, %s6
  $region1: #{tpu_custom_call.1} parent=0
    #allocation2 [shape = 'u8[131072]{0}', space=vmem, size = 0x20000, scoped, tag = 'input window, operand 0, single buffered']
    #allocation3 [shape = 's32[1]{0}', space=sflag, size = 0x4, scoped, tag = 'scoped memory for tpu_custom_call.1']
    #allocation4 [shape = 's32[1]{0}', space=sflag, size = 0x4, scoped, tag = 'scoped memory for tpu_custom_call.1']
    #allocation5 [shape = 'u8[393216]{0}', space=vmem, size = 0x60000, scoped, tag = 'input window, operand 1, single buffered']
    #allocation6 [shape = 's32[1]{0}', space=sflag, size = 0x4, scoped, tag = 'scoped memory for tpu_custom_call.1']
    #allocation7 [shape = 'u8[3072]{0}', space=vmem, size = 0xc00, scoped, tag = 'input window, operand 2, single buffered']
    #allocation8 [shape = 'u8[393216]{0}', space=vmem, size = 0x60000, scoped, tag = 'output window, operand 0, single buffered']
    %10 = vsyncpa [#allocation3], 0
    %11 = vsyncpa [#allocation6], 0
    %12 = vsyncpa [#allocation4], 0
    // Predicated region
    $region2: #{tpu_custom_call.1} parent=1 // pred_check
      _
    $region3: #{tpu_custom_call.1} parent=1 // pred_check_branch
      %14 = sbr.rel (0) target = $region5
    $region4: #{tpu_custom_call.1} parent=1 // pred_region
      %s16 = ssub.s32 4096, 4096
      %17 = vsyncadd [#allocation3], %s16
      %s18 = sshll.u32 [#allocation2], 4
      %s19 = int_to_ptr.vmem [resolvable:$true] %s18
      %24 = dma.hbm_to_vmem [thread:$0]  %s0, 4096, %s19, [#allocation3], 128, 128, 8
    $region5: #{tpu_custom_call.1} parent=1 // pred_fallthru
      _
    // Predicated region
    $region6: #{tpu_custom_call.1} parent=1 // pred_check
      _
    $region7: #{tpu_custom_call.1} parent=1 // pred_check_branch
      %26 = sbr.rel (0) target = $region9
    $region8: #{tpu_custom_call.1} parent=1 // pred_region
      %s28 = ssub.s32 12288, 12288
      %29 = vsyncadd [#allocation6], %s28
      %s30 = sshll.u32 [#allocation5], 4
      %s31 = int_to_ptr.vmem [resolvable:$true] %s30
      %36 = dma.hbm_to_vmem [thread:$0]  %s1, 12288, %s31, [#allocation6], 384, 384, 24
    $region9: #{tpu_custom_call.1} parent=1 // pred_fallthru
      _
    // Predicated region
    $region10: #{tpu_custom_call.1} parent=1 // pred_check
      _
    $region11: #{tpu_custom_call.1} parent=1 // pred_check_branch
      %38 = sbr.rel (0) target = $region13
    $region12: #{tpu_custom_call.1} parent=1 // pred_region
      %s40 = ssub.s32 96, 96
      %41 = vsyncadd [#allocation6], %s40
      %s43 = sshll.u32 [#allocation7], 4
      %s44 = int_to_ptr.vmem [resolvable:$true] %s43
      %46 = dma.hbm_to_vmem [thread:$0]  %s2, 96, %s44, [#allocation6]
    $region13: #{tpu_custom_call.1} parent=1 // pred_fallthru
      _
    // Predicated region
    $region14: #{tpu_custom_call.1} parent=1 // pred_check
      _
    $region15: #{tpu_custom_call.1} parent=1 // pred_check_branch
      %48 = sbr.rel (0) target = $region17
    $region16: #{tpu_custom_call.1} parent=1 // pred_region
      _
    $region17: #{tpu_custom_call.1} parent=1 // pred_fallthru
      _
    // Predicated region
    $region18: #{tpu_custom_call.1} parent=1 // pred_check
      _
    $region19: #{tpu_custom_call.1} parent=1 // pred_check_branch
      %50 = sbr.rel (0) target = $region21
    $region20: #{tpu_custom_call.1} parent=1 // pred_region
      _
    $region21: #{tpu_custom_call.1} parent=1 // pred_fallthru
      _
    // Predicated region
    $region22: #{tpu_custom_call.1} parent=1 // pred_check
      _
    $region23: #{tpu_custom_call.1} parent=1 // pred_check_branch
      %52 = sbr.rel (0) target = $region25
    $region24: #{tpu_custom_call.1} parent=1 // pred_region
      %53 = dma.done [#allocation3], 4096
    $region25: #{tpu_custom_call.1} parent=1 // pred_fallthru
      _
    // Predicated region
    $region26: #{tpu_custom_call.1} parent=1 // pred_check
      _
    $region27: #{tpu_custom_call.1} parent=1 // pred_check_branch
      %55 = sbr.rel (0) target = $region29
    $region28: #{tpu_custom_call.1} parent=1 // pred_region
      %56 = dma.done [#allocation6], 12288
    $region29: #{tpu_custom_call.1} parent=1 // pred_fallthru
      _
    // Predicated region
    $region30: #{tpu_custom_call.1} parent=1 // pred_check
      _
    $region31: #{tpu_custom_call.1} parent=1 // pred_check_branch
      %58 = sbr.rel (0) target = $region33
    $region32: #{tpu_custom_call.1} parent=1 // pred_region
      %59 = dma.done [#allocation6], 96
    $region33: #{tpu_custom_call.1} parent=1 // pred_fallthru
      _
    %v60 = vld [vmem:[#allocation2] sm:$0xff]
    %v61 = vld [vmem:[#allocation2 + $0x8] sm:$0xff]
    %v62 = vld [vmem:[#allocation2 + $0x10] sm:$0xff]
    %v63 = vld [vmem:[#allocation2 + $0x18] sm:$0xff]
    %v64 = vld [vmem:[#allocation2 + $0x20] sm:$0xff]
    %v65 = vld [vmem:[#allocation2 + $0x28] sm:$0xff]
    %v66 = vld [vmem:[#allocation2 + $0x30] sm:$0xff]
    %v67 = vld [vmem:[#allocation2 + $0x38] sm:$0xff]
    %v68 = vld [vmem:[#allocation2 + $0x40] sm:$0xff]
    %v69 = vld [vmem:[#allocation2 + $0x48] sm:$0xff]
    %v70 = vld [vmem:[#allocation2 + $0x50] sm:$0xff]
    %v71 = vld [vmem:[#allocation2 + $0x58] sm:$0xff]
    %v72 = vld [vmem:[#allocation2 + $0x60] sm:$0xff]
    %v73 = vld [vmem:[#allocation2 + $0x68] sm:$0xff]
    %v74 = vld [vmem:[#allocation2 + $0x70] sm:$0xff]
    %v75 = vld [vmem:[#allocation2 + $0x78] sm:$0xff]
    %v76 = vld [vmem:[#allocation2 + $0x80] sm:$0xff]
    %v77 = vld [vmem:[#allocation2 + $0x88] sm:$0xff]
    %v78 = vld [vmem:[#allocation2 + $0x90] sm:$0xff]
    %v79 = vld [vmem:[#allocation2 + $0x98] sm:$0xff]
    %v80 = vld [vmem:[#allocation2 + $0xa0] sm:$0xff]
    %v81 = vld [vmem:[#allocation2 + $0xa8] sm:$0xff]
    %v82 = vld [vmem:[#allocation2 + $0xb0] sm:$0xff]
    %v83 = vld [vmem:[#allocation2 + $0xb8] sm:$0xff]
    %v84 = vld [vmem:[#allocation2 + $0xc0] sm:$0xff]
    %v85 = vld [vmem:[#allocation2 + $0xc8] sm:$0xff]
    %v86 = vld [vmem:[#allocation2 + $0xd0] sm:$0xff]
    %v87 = vld [vmem:[#allocation2 + $0xd8] sm:$0xff]
    %v88 = vld [vmem:[#allocation2 + $0xe0] sm:$0xff]
    %v89 = vld [vmem:[#allocation2 + $0xe8] sm:$0xff]
    %v90 = vld [vmem:[#allocation2 + $0xf0] sm:$0xff]
    %v91 = vld [vmem:[#allocation2 + $0xf8] sm:$0xff]
    %v92 = vunpack.c.l.bf16 %v60
    %v93 = vunpack.c.h.bf16 %v60
    %v94 = vunpack.c.l.bf16 %v61
    %v95 = vunpack.c.h.bf16 %v61
    %v96 = vunpack.c.l.bf16 %v62
    %v97 = vunpack.c.h.bf16 %v62
    %v98 = vunpack.c.l.bf16 %v63
    %v99 = vunpack.c.h.bf16 %v63
    %v100 = vunpack.c.l.bf16 %v64
    %v101 = vunpack.c.h.bf16 %v64
    %v102 = vunpack.c.l.bf16 %v65
    %v103 = vunpack.c.h.bf16 %v65
    %v104 = vunpack.c.l.bf16 %v66
    %v105 = vunpack.c.h.bf16 %v66
    %v106 = vunpack.c.l.bf16 %v67
    %v107 = vunpack.c.h.bf16 %v67
    %v108 = vunpack.c.l.bf16 %v68
    %v109 = vunpack.c.h.bf16 %v68
    %v110 = vunpack.c.l.bf16 %v69
    %v111 = vunpack.c.h.bf16 %v69
    %v112 = vunpack.c.l.bf16 %v70
    %v113 = vunpack.c.h.bf16 %v70
    %v114 = vunpack.c.l.bf16 %v71
    %v115 = vunpack.c.h.bf16 %v71
    %v116 = vunpack.c.l.bf16 %v72
    %v117 = vunpack.c.h.bf16 %v72
    %v118 = vunpack.c.l.bf16 %v73
    %v119 = vunpack.c.h.bf16 %v73
    %v120 = vunpack.c.l.bf16 %v74
    %v121 = vunpack.c.h.bf16 %v74
    %v122 = vunpack.c.l.bf16 %v75
    %v123 = vunpack.c.h.bf16 %v75
    %v124 = vunpack.c.l.bf16 %v76
    %v125 = vunpack.c.h.bf16 %v76
    %v126 = vunpack.c.l.bf16 %v77
    %v127 = vunpack.c.h.bf16 %v77
    %v128 = vunpack.c.l.bf16 %v78
    %v129 = vunpack.c.h.bf16 %v78
    %v130 = vunpack.c.l.bf16 %v79
    %v131 = vunpack.c.h.bf16 %v79
    %v132 = vunpack.c.l.bf16 %v80
    %v133 = vunpack.c.h.bf16 %v80
    %v134 = vunpack.c.l.bf16 %v81
    %v135 = vunpack.c.h.bf16 %v81
    %v136 = vunpack.c.l.bf16 %v82
    %v137 = vunpack.c.h.bf16 %v82
    %v138 = vunpack.c.l.bf16 %v83
    %v139 = vunpack.c.h.bf16 %v83
    %v140 = vunpack.c.l.bf16 %v84
    %v141 = vunpack.c.h.bf16 %v84
    %v142 = vunpack.c.l.bf16 %v85
    %v143 = vunpack.c.h.bf16 %v85
    %v144 = vunpack.c.l.bf16 %v86
    %v145 = vunpack.c.h.bf16 %v86
    %v146 = vunpack.c.l.bf16 %v87
    %v147 = vunpack.c.h.bf16 %v87
    %v148 = vunpack.c.l.bf16 %v88
    %v149 = vunpack.c.h.bf16 %v88
    %v150 = vunpack.c.l.bf16 %v89
    %v151 = vunpack.c.h.bf16 %v89
    %v152 = vunpack.c.l.bf16 %v90
    %v153 = vunpack.c.h.bf16 %v90
    %v154 = vunpack.c.l.bf16 %v91
    %v155 = vunpack.c.h.bf16 %v91
    %v156 = vadd.f32 %v92, %v93
    %157 = vadd.xlane.f32.xlu0 %v156
    %v158 = vpop.xlane.xlu0 %157
    %v159 = vadd.f32 %v94, %v95
    %160 = vadd.xlane.f32.xlu0 %v159
    %v161 = vpop.xlane.xlu0 %160
    %v162 = vadd.f32 %v96, %v97
    %163 = vadd.xlane.f32.xlu0 %v162
    %v164 = vpop.xlane.xlu0 %163
    %v165 = vadd.f32 %v98, %v99
    %166 = vadd.xlane.f32.xlu0 %v165
    %v167 = vpop.xlane.xlu0 %166
    %v168 = vadd.f32 %v100, %v101
    %169 = vadd.xlane.f32.xlu0 %v168
    %v170 = vpop.xlane.xlu0 %169
    %v171 = vadd.f32 %v102, %v103
    %172 = vadd.xlane.f32.xlu0 %v171
    %v173 = vpop.xlane.xlu0 %172
    %v174 = vadd.f32 %v104, %v105
    %175 = vadd.xlane.f32.xlu0 %v174
    %v176 = vpop.xlane.xlu0 %175
    %v177 = vadd.f32 %v106, %v107
    %178 = vadd.xlane.f32.xlu0 %v177
    %v179 = vpop.xlane.xlu0 %178
    %v180 = vadd.f32 %v108, %v109
    %181 = vadd.xlane.f32.xlu0 %v180
    %v182 = vpop.xlane.xlu0 %181
    %v183 = vadd.f32 %v110, %v111
    %184 = vadd.xlane.f32.xlu0 %v183
    %v185 = vpop.xlane.xlu0 %184
    %v186 = vadd.f32 %v112, %v113
    %187 = vadd.xlane.f32.xlu0 %v186
    %v188 = vpop.xlane.xlu0 %187
    %v189 = vadd.f32 %v114, %v115
    %190 = vadd.xlane.f32.xlu0 %v189
    %v191 = vpop.xlane.xlu0 %190
    %v192 = vadd.f32 %v116, %v117
    %193 = vadd.xlane.f32.xlu0 %v192
    %v194 = vpop.xlane.xlu0 %193
    %v195 = vadd.f32 %v118, %v119
    %196 = vadd.xlane.f32.xlu0 %v195
    %v197 = vpop.xlane.xlu0 %196
    %v198 = vadd.f32 %v120, %v121
    %199 = vadd.xlane.f32.xlu0 %v198
    %v200 = vpop.xlane.xlu0 %199
    %v201 = vadd.f32 %v122, %v123
    %202 = vadd.xlane.f32.xlu0 %v201
    %v203 = vpop.xlane.xlu0 %202
    %v204 = vadd.f32 %v124, %v125
    %205 = vadd.xlane.f32.xlu0 %v204
    %v206 = vpop.xlane.xlu0 %205
    %v207 = vadd.f32 %v126, %v127
    %208 = vadd.xlane.f32.xlu0 %v207
    %v209 = vpop.xlane.xlu0 %208
    %v210 = vadd.f32 %v128, %v129
    %211 = vadd.xlane.f32.xlu0 %v210
    %v212 = vpop.xlane.xlu0 %211
    %v213 = vadd.f32 %v130, %v131
    %214 = vadd.xlane.f32.xlu0 %v213
    %v215 = vpop.xlane.xlu0 %214
    %v216 = vadd.f32 %v132, %v133
    %217 = vadd.xlane.f32.xlu0 %v216
    %v218 = vpop.xlane.xlu0 %217
    %v219 = vadd.f32 %v134, %v135
    %220 = vadd.xlane.f32.xlu0 %v219
    %v221 = vpop.xlane.xlu0 %220
    %v222 = vadd.f32 %v136, %v137
    %223 = vadd.xlane.f32.xlu0 %v222
    %v224 = vpop.xlane.xlu0 %223
    %v225 = vadd.f32 %v138, %v139
    %226 = vadd.xlane.f32.xlu0 %v225
    %v227 = vpop.xlane.xlu0 %226
    %v228 = vadd.f32 %v140, %v141
    %229 = vadd.xlane.f32.xlu0 %v228
    %v230 = vpop.xlane.xlu0 %229
    %v231 = vadd.f32 %v142, %v143
    %232 = vadd.xlane.f32.xlu0 %v231
    %v233 = vpop.xlane.xlu0 %232
    %v234 = vadd.f32 %v144, %v145
    %235 = vadd.xlane.f32.xlu0 %v234
    %v236 = vpop.xlane.xlu0 %235
    %v237 = vadd.f32 %v146, %v147
    %238 = vadd.xlane.f32.xlu0 %v237
    %v239 = vpop.xlane.xlu0 %238
    %v240 = vadd.f32 %v148, %v149
    %241 = vadd.xlane.f32.xlu0 %v240
    %v242 = vpop.xlane.xlu0 %241
    %v243 = vadd.f32 %v150, %v151
    %244 = vadd.xlane.f32.xlu0 %v243
    %v245 = vpop.xlane.xlu0 %244
    %v246 = vadd.f32 %v152, %v153
    %247 = vadd.xlane.f32.xlu0 %v246
    %v248 = vpop.xlane.xlu0 %247
    %v249 = vadd.f32 %v154, %v155
    %250 = vadd.xlane.f32.xlu0 %v249
    %v251 = vpop.xlane.xlu0 %250
    %v252 = vrcp.pop 256.0
    %v253 = vmul.f32 %v158, %v252
    %v254 = vmul.f32 %v161, %v252
    %v255 = vmul.f32 %v164, %v252
    %v256 = vmul.f32 %v167, %v252
    %v257 = vmul.f32 %v170, %v252
    %v258 = vmul.f32 %v173, %v252
    %v259 = vmul.f32 %v176, %v252
    %v260 = vmul.f32 %v179, %v252
    %v261 = vmul.f32 %v182, %v252
    %v262 = vmul.f32 %v185, %v252
    %v263 = vmul.f32 %v188, %v252
    %v264 = vmul.f32 %v191, %v252
    %v265 = vmul.f32 %v194, %v252
    %v266 = vmul.f32 %v197, %v252
    %v267 = vmul.f32 %v200, %v252
    %v268 = vmul.f32 %v203, %v252
    %v269 = vmul.f32 %v206, %v252
    %v270 = vmul.f32 %v209, %v252
    %v271 = vmul.f32 %v212, %v252
    %v272 = vmul.f32 %v215, %v252
    %v273 = vmul.f32 %v218, %v252
    %v274 = vmul.f32 %v221, %v252
    %v275 = vmul.f32 %v224, %v252
    %v276 = vmul.f32 %v227, %v252
    %v277 = vmul.f32 %v230, %v252
    %v278 = vmul.f32 %v233, %v252
    %v279 = vmul.f32 %v236, %v252
    %v280 = vmul.f32 %v239, %v252
    %v281 = vmul.f32 %v242, %v252
    %v282 = vmul.f32 %v245, %v252
    %v283 = vmul.f32 %v248, %v252
    %v284 = vmul.f32 %v251, %v252
    %v285 = vsub.f32 %v92, %v253
    %v286 = vsub.f32 %v93, %v253
    %v287 = vsub.f32 %v94, %v254
    %v288 = vsub.f32 %v95, %v254
    %v289 = vsub.f32 %v96, %v255
    %v290 = vsub.f32 %v97, %v255
    %v291 = vsub.f32 %v98, %v256
    %v292 = vsub.f32 %v99, %v256
    %v293 = vsub.f32 %v100, %v257
    %v294 = vsub.f32 %v101, %v257
    %v295 = vsub.f32 %v102, %v258
    %v296 = vsub.f32 %v103, %v258
    %v297 = vsub.f32 %v104, %v259
    %v298 = vsub.f32 %v105, %v259
    %v299 = vsub.f32 %v106, %v260
    %v300 = vsub.f32 %v107, %v260
    %v301 = vsub.f32 %v108, %v261
    %v302 = vsub.f32 %v109, %v261
    %v303 = vsub.f32 %v110, %v262
    %v304 = vsub.f32 %v111, %v262
    %v305 = vsub.f32 %v112, %v263
    %v306 = vsub.f32 %v113, %v263
    %v307 = vsub.f32 %v114, %v264
    %v308 = vsub.f32 %v115, %v264
    %v309 = vsub.f32 %v116, %v265
    %v310 = vsub.f32 %v117, %v265
    %v311 = vsub.f32 %v118, %v266
    %v312 = vsub.f32 %v119, %v266
    %v313 = vsub.f32 %v120, %v267
    %v314 = vsub.f32 %v121, %v267
    %v315 = vsub.f32 %v122, %v268
    %v316 = vsub.f32 %v123, %v268
    %v317 = vsub.f32 %v124, %v269
    %v318 = vsub.f32 %v125, %v269
    %v319 = vsub.f32 %v126, %v270
    %v320 = vsub.f32 %v127, %v270
    %v321 = vsub.f32 %v128, %v271
    %v322 = vsub.f32 %v129, %v271
    %v323 = vsub.f32 %v130, %v272
    %v324 = vsub.f32 %v131, %v272
    %v325 = vsub.f32 %v132, %v273
    %v326 = vsub.f32 %v133, %v273
    %v327 = vsub.f32 %v134, %v274
    %v328 = vsub.f32 %v135, %v274
    %v329 = vsub.f32 %v136, %v275
    %v330 = vsub.f32 %v137, %v275
    %v331 = vsub.f32 %v138, %v276
    %v332 = vsub.f32 %v139, %v276
    %v333 = vsub.f32 %v140, %v277
    %v334 = vsub.f32 %v141, %v277
    %v335 = vsub.f32 %v142, %v278
    %v336 = vsub.f32 %v143, %v278
    %v337 = vsub.f32 %v144, %v279
    %v338 = vsub.f32 %v145, %v279
    %v339 = vsub.f32 %v146, %v280
    %v340 = vsub.f32 %v147, %v280
    %v341 = vsub.f32 %v148, %v281
    %v342 = vsub.f32 %v149, %v281
    %v343 = vsub.f32 %v150, %v282
    %v344 = vsub.f32 %v151, %v282
    %v345 = vsub.f32 %v152, %v283
    %v346 = vsub.f32 %v153, %v283
    %v347 = vsub.f32 %v154, %v284
    %v348 = vsub.f32 %v155, %v284
    %v349 = vmul.f32 %v285, %v285
    %v350 = vmul.f32 %v286, %v286
    %v351 = vmul.f32 %v287, %v287
    %v352 = vmul.f32 %v288, %v288
    %v353 = vmul.f32 %v289, %v289
    %v354 = vmul.f32 %v290, %v290
    %v355 = vmul.f32 %v291, %v291
    %v356 = vmul.f32 %v292, %v292
    %v357 = vmul.f32 %v293, %v293
    %v358 = vmul.f32 %v294, %v294
    %v359 = vmul.f32 %v295, %v295
    %v360 = vmul.f32 %v296, %v296
    %v361 = vmul.f32 %v297, %v297
    %v362 = vmul.f32 %v298, %v298
    %v363 = vmul.f32 %v299, %v299
    %v364 = vmul.f32 %v300, %v300
    %v365 = vmul.f32 %v301, %v301
    %v366 = vmul.f32 %v302, %v302
    %v367 = vmul.f32 %v303, %v303
    %v368 = vmul.f32 %v304, %v304
    %v369 = vmul.f32 %v305, %v305
    %v370 = vmul.f32 %v306, %v306
    %v371 = vmul.f32 %v307, %v307
    %v372 = vmul.f32 %v308, %v308
    %v373 = vmul.f32 %v309, %v309
    %v374 = vmul.f32 %v310, %v310
    %v375 = vmul.f32 %v311, %v311
    %v376 = vmul.f32 %v312, %v312
    %v377 = vmul.f32 %v313, %v313
    %v378 = vmul.f32 %v314, %v314
    %v379 = vmul.f32 %v315, %v315
    %v380 = vmul.f32 %v316, %v316
    %v381 = vmul.f32 %v317, %v317
    %v382 = vmul.f32 %v318, %v318
    %v383 = vmul.f32 %v319, %v319
    %v384 = vmul.f32 %v320, %v320
    %v385 = vmul.f32 %v321, %v321
    %v386 = vmul.f32 %v322, %v322
    %v387 = vmul.f32 %v323, %v323
    %v388 = vmul.f32 %v324, %v324
    %v389 = vmul.f32 %v325, %v325
    %v390 = vmul.f32 %v326, %v326
    %v391 = vmul.f32 %v327, %v327
    %v392 = vmul.f32 %v328, %v328
    %v393 = vmul.f32 %v329, %v329
    %v394 = vmul.f32 %v330, %v330
    %v395 = vmul.f32 %v331, %v331
    %v396 = vmul.f32 %v332, %v332
    %v397 = vmul.f32 %v333, %v333
    %v398 = vmul.f32 %v334, %v334
    %v399 = vmul.f32 %v335, %v335
    %v400 = vmul.f32 %v336, %v336
    %v401 = vmul.f32 %v337, %v337
    %v402 = vmul.f32 %v338, %v338
    %v403 = vmul.f32 %v339, %v339
    %v404 = vmul.f32 %v340, %v340
    %v405 = vmul.f32 %v341, %v341
    %v406 = vmul.f32 %v342, %v342
    %v407 = vmul.f32 %v343, %v343
    %v408 = vmul.f32 %v344, %v344
    %v409 = vmul.f32 %v345, %v345
    %v410 = vmul.f32 %v346, %v346
    %v411 = vmul.f32 %v347, %v347
    %v412 = vmul.f32 %v348, %v348
    %v413 = vadd.f32 %v349, %v350
    %414 = vadd.xlane.f32.xlu0 %v413
    %v415 = vpop.xlane.xlu0 %414
    %v416 = vadd.f32 %v351, %v352
    %417 = vadd.xlane.f32.xlu0 %v416
    %v418 = vpop.xlane.xlu0 %417
    %v419 = vadd.f32 %v353, %v354
    %420 = vadd.xlane.f32.xlu0 %v419
    %v421 = vpop.xlane.xlu0 %420
    %v422 = vadd.f32 %v355, %v356
    %423 = vadd.xlane.f32.xlu0 %v422
    %v424 = vpop.xlane.xlu0 %423
    %v425 = vadd.f32 %v357, %v358
    %426 = vadd.xlane.f32.xlu0 %v425
    %v427 = vpop.xlane.xlu0 %426
    %v428 = vadd.f32 %v359, %v360
    %429 = vadd.xlane.f32.xlu0 %v428
    %v430 = vpop.xlane.xlu0 %429
    %v431 = vadd.f32 %v361, %v362
    %432 = vadd.xlane.f32.xlu0 %v431
    %v433 = vpop.xlane.xlu0 %432
    %v434 = vadd.f32 %v363, %v364
    %435 = vadd.xlane.f32.xlu0 %v434
    %v436 = vpop.xlane.xlu0 %435
    %v437 = vadd.f32 %v365, %v366
    %438 = vadd.xlane.f32.xlu0 %v437
    %v439 = vpop.xlane.xlu0 %438
    %v440 = vadd.f32 %v367, %v368
    %441 = vadd.xlane.f32.xlu0 %v440
    %v442 = vpop.xlane.xlu0 %441
    %v443 = vadd.f32 %v369, %v370
    %444 = vadd.xlane.f32.xlu0 %v443
    %v445 = vpop.xlane.xlu0 %444
    %v446 = vadd.f32 %v371, %v372
    %447 = vadd.xlane.f32.xlu0 %v446
    %v448 = vpop.xlane.xlu0 %447
    %v449 = vadd.f32 %v373, %v374
    %450 = vadd.xlane.f32.xlu0 %v449
    %v451 = vpop.xlane.xlu0 %450
    %v452 = vadd.f32 %v375, %v376
    %453 = vadd.xlane.f32.xlu0 %v452
    %v454 = vpop.xlane.xlu0 %453
    %v455 = vadd.f32 %v377, %v378
    %456 = vadd.xlane.f32.xlu0 %v455
    %v457 = vpop.xlane.xlu0 %456
    %v458 = vadd.f32 %v379, %v380
    %459 = vadd.xlane.f32.xlu0 %v458
    %v460 = vpop.xlane.xlu0 %459
    %v461 = vadd.f32 %v381, %v382
    %462 = vadd.xlane.f32.xlu0 %v461
    %v463 = vpop.xlane.xlu0 %462
    %v464 = vadd.f32 %v383, %v384
    %465 = vadd.xlane.f32.xlu0 %v464
    %v466 = vpop.xlane.xlu0 %465
    %v467 = vadd.f32 %v385, %v386
    %468 = vadd.xlane.f32.xlu0 %v467
    %v469 = vpop.xlane.xlu0 %468
    %v470 = vadd.f32 %v387, %v388
    %471 = vadd.xlane.f32.xlu0 %v470
    %v472 = vpop.xlane.xlu0 %471
    %v473 = vadd.f32 %v389, %v390
    %474 = vadd.xlane.f32.xlu0 %v473
    %v475 = vpop.xlane.xlu0 %474
    %v476 = vadd.f32 %v391, %v392
    %477 = vadd.xlane.f32.xlu0 %v476
    %v478 = vpop.xlane.xlu0 %477
    %v479 = vadd.f32 %v393, %v394
    %480 = vadd.xlane.f32.xlu0 %v479
    %v481 = vpop.xlane.xlu0 %480
    %v482 = vadd.f32 %v395, %v396
    %483 = vadd.xlane.f32.xlu0 %v482
    %v484 = vpop.xlane.xlu0 %483
    %v485 = vadd.f32 %v397, %v398
    %486 = vadd.xlane.f32.xlu0 %v485
    %v487 = vpop.xlane.xlu0 %486
    %v488 = vadd.f32 %v399, %v400
    %489 = vadd.xlane.f32.xlu0 %v488
    %v490 = vpop.xlane.xlu0 %489
    %v491 = vadd.f32 %v401, %v402
    %492 = vadd.xlane.f32.xlu0 %v491
    %v493 = vpop.xlane.xlu0 %492
    %v494 = vadd.f32 %v403, %v404
    %495 = vadd.xlane.f32.xlu0 %v494
    %v496 = vpop.xlane.xlu0 %495
    %v497 = vadd.f32 %v405, %v406
    %498 = vadd.xlane.f32.xlu0 %v497
    %v499 = vpop.xlane.xlu0 %498
    %v500 = vadd.f32 %v407, %v408
    %501 = vadd.xlane.f32.xlu0 %v500
    %v502 = vpop.xlane.xlu0 %501
    %v503 = vadd.f32 %v409, %v410
    %504 = vadd.xlane.f32.xlu0 %v503
    %v505 = vpop.xlane.xlu0 %504
    %v506 = vadd.f32 %v411, %v412
    %507 = vadd.xlane.f32.xlu0 %v506
    %v508 = vpop.xlane.xlu0 %507
    %v509 = vmul.f32 %v415, %v252
    %v510 = vmul.f32 %v418, %v252
    %v511 = vmul.f32 %v421, %v252
    %v512 = vmul.f32 %v424, %v252
    %v513 = vmul.f32 %v427, %v252
    %v514 = vmul.f32 %v430, %v252
    %v515 = vmul.f32 %v433, %v252
    %v516 = vmul.f32 %v436, %v252
    %v517 = vmul.f32 %v439, %v252
    %v518 = vmul.f32 %v442, %v252
    %v519 = vmul.f32 %v445, %v252
    %v520 = vmul.f32 %v448, %v252
    %v521 = vmul.f32 %v451, %v252
    %v522 = vmul.f32 %v454, %v252
    %v523 = vmul.f32 %v457, %v252
    %v524 = vmul.f32 %v460, %v252
    %v525 = vmul.f32 %v463, %v252
    %v526 = vmul.f32 %v466, %v252
    %v527 = vmul.f32 %v469, %v252
    %v528 = vmul.f32 %v472, %v252
    %v529 = vmul.f32 %v475, %v252
    %v530 = vmul.f32 %v478, %v252
    %v531 = vmul.f32 %v481, %v252
    %v532 = vmul.f32 %v484, %v252
    %v533 = vmul.f32 %v487, %v252
    %v534 = vmul.f32 %v490, %v252
    %v535 = vmul.f32 %v493, %v252
    %v536 = vmul.f32 %v496, %v252
    %v537 = vmul.f32 %v499, %v252
    %v538 = vmul.f32 %v502, %v252
    %v539 = vmul.f32 %v505, %v252
    %v540 = vmul.f32 %v508, %v252
    %v541 = vadd.f32 %v509, 1e-06
    %v542 = vadd.f32 %v510, 1e-06
    %v543 = vadd.f32 %v511, 1e-06
    %v544 = vadd.f32 %v512, 1e-06
    %v545 = vadd.f32 %v513, 1e-06
    %v546 = vadd.f32 %v514, 1e-06
    %v547 = vadd.f32 %v515, 1e-06
    %v548 = vadd.f32 %v516, 1e-06
    %v549 = vadd.f32 %v517, 1e-06
    %v550 = vadd.f32 %v518, 1e-06
    %v551 = vadd.f32 %v519, 1e-06
    %v552 = vadd.f32 %v520, 1e-06
    %v553 = vadd.f32 %v521, 1e-06
    %v554 = vadd.f32 %v522, 1e-06
    %v555 = vadd.f32 %v523, 1e-06
    %v556 = vadd.f32 %v524, 1e-06
    %v557 = vadd.f32 %v525, 1e-06
    %v558 = vadd.f32 %v526, 1e-06
    %v559 = vadd.f32 %v527, 1e-06
    %v560 = vadd.f32 %v528, 1e-06
    %v561 = vadd.f32 %v529, 1e-06
    %v562 = vadd.f32 %v530, 1e-06
    %v563 = vadd.f32 %v531, 1e-06
    %v564 = vadd.f32 %v532, 1e-06
    %v565 = vadd.f32 %v533, 1e-06
    %v566 = vadd.f32 %v534, 1e-06
    %v567 = vadd.f32 %v535, 1e-06
    %v568 = vadd.f32 %v536, 1e-06
    %v569 = vadd.f32 %v537, 1e-06
    %v570 = vadd.f32 %v538, 1e-06
    %v571 = vadd.f32 %v539, 1e-06
    %v572 = vadd.f32 %v540, 1e-06
    %v573 = vrsqrt.pop %v541
    %v574 = vrsqrt.pop %v542
    %v575 = vrsqrt.pop %v543
    %v576 = vrsqrt.pop %v544
    %v577 = vrsqrt.pop %v545
    %v578 = vrsqrt.pop %v546
    %v579 = vrsqrt.pop %v547
    %v580 = vrsqrt.pop %v548
    %v581 = vrsqrt.pop %v549
    %v582 = vrsqrt.pop %v550
    %v583 = vrsqrt.pop %v551
    %v584 = vrsqrt.pop %v552
    %v585 = vrsqrt.pop %v553
    %v586 = vrsqrt.pop %v554
    %v587 = vrsqrt.pop %v555
    %v588 = vrsqrt.pop %v556
    %v589 = vrsqrt.pop %v557
    %v590 = vrsqrt.pop %v558
    %v591 = vrsqrt.pop %v559
    %v592 = vrsqrt.pop %v560
    %v593 = vrsqrt.pop %v561
    %v594 = vrsqrt.pop %v562
    %v595 = vrsqrt.pop %v563
    %v596 = vrsqrt.pop %v564
    %v597 = vrsqrt.pop %v565
    %v598 = vrsqrt.pop %v566
    %v599 = vrsqrt.pop %v567
    %v600 = vrsqrt.pop %v568
    %v601 = vrsqrt.pop %v569
    %v602 = vrsqrt.pop %v570
    %v603 = vrsqrt.pop %v571
    %v604 = vrsqrt.pop %v572
    %v605 = vmul.f32 %v285, %v573
    %v606 = vmul.f32 %v286, %v573
    %v607 = vmul.f32 %v287, %v574
    %v608 = vmul.f32 %v288, %v574
    %v609 = vmul.f32 %v289, %v575
    %v610 = vmul.f32 %v290, %v575
    %v611 = vmul.f32 %v291, %v576
    %v612 = vmul.f32 %v292, %v576
    %v613 = vmul.f32 %v293, %v577
    %v614 = vmul.f32 %v294, %v577
    %v615 = vmul.f32 %v295, %v578
    %v616 = vmul.f32 %v296, %v578
    %v617 = vmul.f32 %v297, %v579
    %v618 = vmul.f32 %v298, %v579
    %v619 = vmul.f32 %v299, %v580
    %v620 = vmul.f32 %v300, %v580
    %v621 = vmul.f32 %v301, %v581
    %v622 = vmul.f32 %v302, %v581
    %v623 = vmul.f32 %v303, %v582
    %v624 = vmul.f32 %v304, %v582
    %v625 = vmul.f32 %v305, %v583
    %v626 = vmul.f32 %v306, %v583
    %v627 = vmul.f32 %v307, %v584
    %v628 = vmul.f32 %v308, %v584
    %v629 = vmul.f32 %v309, %v585
    %v630 = vmul.f32 %v310, %v585
    %v631 = vmul.f32 %v311, %v586
    %v632 = vmul.f32 %v312, %v586
    %v633 = vmul.f32 %v313, %v587
    %v634 = vmul.f32 %v314, %v587
    %v635 = vmul.f32 %v315, %v588
    %v636 = vmul.f32 %v316, %v588
    %v637 = vmul.f32 %v317, %v589
    %v638 = vmul.f32 %v318, %v589
    %v639 = vmul.f32 %v319, %v590
    %v640 = vmul.f32 %v320, %v590
    %v641 = vmul.f32 %v321, %v591
    %v642 = vmul.f32 %v322, %v591
    %v643 = vmul.f32 %v323, %v592
    %v644 = vmul.f32 %v324, %v592
    %v645 = vmul.f32 %v325, %v593
    %v646 = vmul.f32 %v326, %v593
    %v647 = vmul.f32 %v327, %v594
    %v648 = vmul.f32 %v328, %v594
    %v649 = vmul.f32 %v329, %v595
    %v650 = vmul.f32 %v330, %v595
    %v651 = vmul.f32 %v331, %v596
    %v652 = vmul.f32 %v332, %v596
    %v653 = vmul.f32 %v333, %v597
    %v654 = vmul.f32 %v334, %v597
    %v655 = vmul.f32 %v335, %v598
    %v656 = vmul.f32 %v336, %v598
    %v657 = vmul.f32 %v337, %v599
    %v658 = vmul.f32 %v338, %v599
    %v659 = vmul.f32 %v339, %v600
    %v660 = vmul.f32 %v340, %v600
    %v661 = vmul.f32 %v341, %v601
    %v662 = vmul.f32 %v342, %v601
    %v663 = vmul.f32 %v343, %v602
    %v664 = vmul.f32 %v344, %v602
    %v665 = vmul.f32 %v345, %v603
    %v666 = vmul.f32 %v346, %v603
    %v667 = vmul.f32 %v347, %v604
    %v668 = vmul.f32 %v348, %v604
    %v669 = vld [vmem:[%s3] sm:$0x3]
    %v671 = vlaneseq
    %v672 = vshrl.u32 %v671, 7
    %v673 = vsub.s32 0, %v672
    %v674 = vrot.slane %v669, %v673
    %v675 = vlaneseq
    %v676 = vshrl.u32 %v675, 7
    %v677 = vsub.s32 1, %v676
    %v678 = vrot.slane %v669, %v677
    %v681 = vmul.f32 %v605, %v674
    %v682 = vmul.f32 %v606, %v678
    %v683 = vmul.f32 %v607, %v674
    %v684 = vmul.f32 %v608, %v678
    %v685 = vmul.f32 %v609, %v674
    %v686 = vmul.f32 %v610, %v678
    %v687 = vmul.f32 %v611, %v674
    %v688 = vmul.f32 %v612, %v678
    %v689 = vmul.f32 %v613, %v674
    %v690 = vmul.f32 %v614, %v678
    %v691 = vmul.f32 %v615, %v674
    %v692 = vmul.f32 %v616, %v678
    %v693 = vmul.f32 %v617, %v674
    %v694 = vmul.f32 %v618, %v678
    %v695 = vmul.f32 %v619, %v674
    %v696 = vmul.f32 %v620, %v678
    %v697 = vmul.f32 %v621, %v674
    %v698 = vmul.f32 %v622, %v678
    %v699 = vmul.f32 %v623, %v674
    %v700 = vmul.f32 %v624, %v678
    %v701 = vmul.f32 %v625, %v674
    %v702 = vmul.f32 %v626, %v678
    %v703 = vmul.f32 %v627, %v674
    %v704 = vmul.f32 %v628, %v678
    %v705 = vmul.f32 %v629, %v674
    %v706 = vmul.f32 %v630, %v678
    %v707 = vmul.f32 %v631, %v674
    %v708 = vmul.f32 %v632, %v678
    %v709 = vmul.f32 %v633, %v674
    %v710 = vmul.f32 %v634, %v678
    %v711 = vmul.f32 %v635, %v674
    %v712 = vmul.f32 %v636, %v678
    %v713 = vmul.f32 %v637, %v674
    %v714 = vmul.f32 %v638, %v678
    %v715 = vmul.f32 %v639, %v674
    %v716 = vmul.f32 %v640, %v678
    %v717 = vmul.f32 %v641, %v674
    %v718 = vmul.f32 %v642, %v678
    %v719 = vmul.f32 %v643, %v674
    %v720 = vmul.f32 %v644, %v678
    %v721 = vmul.f32 %v645, %v674
    %v722 = vmul.f32 %v646, %v678
    %v723 = vmul.f32 %v647, %v674
    %v724 = vmul.f32 %v648, %v678
    %v725 = vmul.f32 %v649, %v674
    %v726 = vmul.f32 %v650, %v678
    %v727 = vmul.f32 %v651, %v674
    %v728 = vmul.f32 %v652, %v678
    %v729 = vmul.f32 %v653, %v674
    %v730 = vmul.f32 %v654, %v678
    %v731 = vmul.f32 %v655, %v674
    %v732 = vmul.f32 %v656, %v678
    %v733 = vmul.f32 %v657, %v674
    %v734 = vmul.f32 %v658, %v678
    %v735 = vmul.f32 %v659, %v674
    %v736 = vmul.f32 %v660, %v678
    %v737 = vmul.f32 %v661, %v674
    %v738 = vmul.f32 %v662, %v678
    %v739 = vmul.f32 %v663, %v674
    %v740 = vmul.f32 %v664, %v678
    %v741 = vmul.f32 %v665, %v674
    %v742 = vmul.f32 %v666, %v678
    %v743 = vmul.f32 %v667, %v674
    %v744 = vmul.f32 %v668, %v678
    %v745 = vld [vmem:[%s4] sm:$0x3]
    %v747 = vlaneseq
    %v748 = vshrl.u32 %v747, 7
    %v749 = vsub.s32 0, %v748
    %v750 = vrot.slane %v745, %v749
    %v751 = vlaneseq
    %v752 = vshrl.u32 %v751, 7
    %v753 = vsub.s32 1, %v752
    %v754 = vrot.slane %v745, %v753
    %v757 = vadd.f32 %v681, %v750
    %v758 = vadd.f32 %v682, %v754
    %v759 = vadd.f32 %v683, %v750
    %v760 = vadd.f32 %v684, %v754
    %v761 = vadd.f32 %v685, %v750
    %v762 = vadd.f32 %v686, %v754
    %v763 = vadd.f32 %v687, %v750
    %v764 = vadd.f32 %v688, %v754
    %v765 = vadd.f32 %v689, %v750
    %v766 = vadd.f32 %v690, %v754
    %v767 = vadd.f32 %v691, %v750
    %v768 = vadd.f32 %v692, %v754
    %v769 = vadd.f32 %v693, %v750
    %v770 = vadd.f32 %v694, %v754
    %v771 = vadd.f32 %v695, %v750
    %v772 = vadd.f32 %v696, %v754
    %v773 = vadd.f32 %v697, %v750
    %v774 = vadd.f32 %v698, %v754
    %v775 = vadd.f32 %v699, %v750
    %v776 = vadd.f32 %v700, %v754
    %v777 = vadd.f32 %v701, %v750
    %v778 = vadd.f32 %v702, %v754
    %v779 = vadd.f32 %v703, %v750
    %v780 = vadd.f32 %v704, %v754
    %v781 = vadd.f32 %v705, %v750
    %v782 = vadd.f32 %v706, %v754
    %v783 = vadd.f32 %v707, %v750
    %v784 = vadd.f32 %v708, %v754
    %v785 = vadd.f32 %v709, %v750
    %v786 = vadd.f32 %v710, %v754
    %v787 = vadd.f32 %v711, %v750
    %v788 = vadd.f32 %v712, %v754
    %v789 = vadd.f32 %v713, %v750
    %v790 = vadd.f32 %v714, %v754
    %v791 = vadd.f32 %v715, %v750
    %v792 = vadd.f32 %v716, %v754
    %v793 = vadd.f32 %v717, %v750
    %v794 = vadd.f32 %v718, %v754
    %v795 = vadd.f32 %v719, %v750
    %v796 = vadd.f32 %v720, %v754
    %v797 = vadd.f32 %v721, %v750
    %v798 = vadd.f32 %v722, %v754
    %v799 = vadd.f32 %v723, %v750
    %v800 = vadd.f32 %v724, %v754
    %v801 = vadd.f32 %v725, %v750
    %v802 = vadd.f32 %v726, %v754
    %v803 = vadd.f32 %v727, %v750
    %v804 = vadd.f32 %v728, %v754
    %v805 = vadd.f32 %v729, %v750
    %v806 = vadd.f32 %v730, %v754
    %v807 = vadd.f32 %v731, %v750
    %v808 = vadd.f32 %v732, %v754
    %v809 = vadd.f32 %v733, %v750
    %v810 = vadd.f32 %v734, %v754
    %v811 = vadd.f32 %v735, %v750
    %v812 = vadd.f32 %v736, %v754
    %v813 = vadd.f32 %v737, %v750
    %v814 = vadd.f32 %v738, %v754
    %v815 = vadd.f32 %v739, %v750
    %v816 = vadd.f32 %v740, %v754
    %v817 = vadd.f32 %v741, %v750
    %v818 = vadd.f32 %v742, %v754
    %v819 = vadd.f32 %v743, %v750
    %v820 = vadd.f32 %v744, %v754
    %v821 = vpack.c.bf16 %v759, %v757
    %v822 = vpack.c.bf16 %v760, %v758
    %v823 = vpack.c.bf16 %v763, %v761
    %v824 = vpack.c.bf16 %v764, %v762
    %v825 = vpack.c.bf16 %v767, %v765
    %v826 = vpack.c.bf16 %v768, %v766
    %v827 = vpack.c.bf16 %v771, %v769
    %v828 = vpack.c.bf16 %v772, %v770
    %v829 = vpack.c.bf16 %v775, %v773
    %v830 = vpack.c.bf16 %v776, %v774
    %v831 = vpack.c.bf16 %v779, %v777
    %v832 = vpack.c.bf16 %v780, %v778
    %v833 = vpack.c.bf16 %v783, %v781
    %v834 = vpack.c.bf16 %v784, %v782
    %v835 = vpack.c.bf16 %v787, %v785
    %v836 = vpack.c.bf16 %v788, %v786
    %v837 = vpack.c.bf16 %v791, %v789
    %v838 = vpack.c.bf16 %v792, %v790
    %v839 = vpack.c.bf16 %v795, %v793
    %v840 = vpack.c.bf16 %v796, %v794
    %v841 = vpack.c.bf16 %v799, %v797
    %v842 = vpack.c.bf16 %v800, %v798
    %v843 = vpack.c.bf16 %v803, %v801
    %v844 = vpack.c.bf16 %v804, %v802
    %v845 = vpack.c.bf16 %v807, %v805
    %v846 = vpack.c.bf16 %v808, %v806
    %v847 = vpack.c.bf16 %v811, %v809
    %v848 = vpack.c.bf16 %v812, %v810
    %v849 = vpack.c.bf16 %v815, %v813
    %v850 = vpack.c.bf16 %v816, %v814
    %v851 = vpack.c.bf16 %v819, %v817
    %v852 = vpack.c.bf16 %v820, %v818
    %v853 = vld [vmem:[#allocation5] sm:$0xff]
    %v854 = vld [vmem:[#allocation5 + $0x8] sm:$0xff]
    %v855 = vld [vmem:[#allocation5 + $0x10] sm:$0xff]
    %v856 = vld [vmem:[#allocation5 + $0x18] sm:$0xff]
    %v857 = vld [vmem:[#allocation5 + $0x20] sm:$0xff]
    %v858 = vld [vmem:[#allocation5 + $0x28] sm:$0xff]
    %v859 = vld [vmem:[#allocation5 + $0x30] sm:$0xff]
    %v860 = vld [vmem:[#allocation5 + $0x38] sm:$0xff]
    %v861 = vld [vmem:[#allocation5 + $0x40] sm:$0xff]
    %v862 = vld [vmem:[#allocation5 + $0x48] sm:$0xff]
    %v863 = vld [vmem:[#allocation5 + $0x50] sm:$0xff]
    %v864 = vld [vmem:[#allocation5 + $0x58] sm:$0xff]
    %v865 = vld [vmem:[#allocation5 + $0x60] sm:$0xff]
    %v866 = vld [vmem:[#allocation5 + $0x68] sm:$0xff]
    %v867 = vld [vmem:[#allocation5 + $0x70] sm:$0xff]
    %v868 = vld [vmem:[#allocation5 + $0x78] sm:$0xff]
    %v869 = vld [vmem:[#allocation5 + $0x80] sm:$0xff]
    %v870 = vld [vmem:[#allocation5 + $0x88] sm:$0xff]
    %v871 = vld [vmem:[#allocation5 + $0x90] sm:$0xff]
    %v872 = vld [vmem:[#allocation5 + $0x98] sm:$0xff]
    %v873 = vld [vmem:[#allocation5 + $0xa0] sm:$0xff]
    %v874 = vld [vmem:[#allocation5 + $0xa8] sm:$0xff]
    %v875 = vld [vmem:[#allocation5 + $0xb0] sm:$0xff]
    %v876 = vld [vmem:[#allocation5 + $0xb8] sm:$0xff]
    %v877 = vld [vmem:[#allocation5 + $0xc0] sm:$0xff]
    %v878 = vld [vmem:[#allocation5 + $0xc8] sm:$0xff]
    %v879 = vld [vmem:[#allocation5 + $0xd0] sm:$0xff]
    %v880 = vld [vmem:[#allocation5 + $0xd8] sm:$0xff]
    %v881 = vld [vmem:[#allocation5 + $0xe0] sm:$0xff]
    %v882 = vld [vmem:[#allocation5 + $0xe8] sm:$0xff]
    %v883 = vld [vmem:[#allocation5 + $0xf0] sm:$0xff]
    %v884 = vld [vmem:[#allocation5 + $0xf8] sm:$0xff]
    %v885 = vld [vmem:[#allocation5 + $0x100] sm:$0xff]
    %v886 = vld [vmem:[#allocation5 + $0x108] sm:$0xff]
    %v887 = vld [vmem:[#allocation5 + $0x110] sm:$0xff]
    %v888 = vld [vmem:[#allocation5 + $0x118] sm:$0xff]
    %v889 = vld [vmem:[#allocation5 + $0x120] sm:$0xff]
    %v890 = vld [vmem:[#allocation5 + $0x128] sm:$0xff]
    %v891 = vld [vmem:[#allocation5 + $0x130] sm:$0xff]
    %v892 = vld [vmem:[#allocation5 + $0x138] sm:$0xff]
    %v893 = vld [vmem:[#allocation5 + $0x140] sm:$0xff]
    %v894 = vld [vmem:[#allocation5 + $0x148] sm:$0xff]
    %v895 = vld [vmem:[#allocation5 + $0x150] sm:$0xff]
    %v896 = vld [vmem:[#allocation5 + $0x158] sm:$0xff]
    %v897 = vld [vmem:[#allocation5 + $0x160] sm:$0xff]
    %v898 = vld [vmem:[#allocation5 + $0x168] sm:$0xff]
    %v899 = vld [vmem:[#allocation5 + $0x170] sm:$0xff]
    %v900 = vld [vmem:[#allocation5 + $0x178] sm:$0xff]
    %v901 = vld [vmem:[#allocation5 + $0x180] sm:$0xff]
    %v902 = vld [vmem:[#allocation5 + $0x188] sm:$0xff]
    %v903 = vld [vmem:[#allocation5 + $0x190] sm:$0xff]
    %v904 = vld [vmem:[#allocation5 + $0x198] sm:$0xff]
    %v905 = vld [vmem:[#allocation5 + $0x1a0] sm:$0xff]
    %v906 = vld [vmem:[#allocation5 + $0x1a8] sm:$0xff]
    %v907 = vld [vmem:[#allocation5 + $0x1b0] sm:$0xff]
    %v908 = vld [vmem:[#allocation5 + $0x1b8] sm:$0xff]
    %v909 = vld [vmem:[#allocation5 + $0x1c0] sm:$0xff]
    %v910 = vld [vmem:[#allocation5 + $0x1c8] sm:$0xff]
    %v911 = vld [vmem:[#allocation5 + $0x1d0] sm:$0xff]
    %v912 = vld [vmem:[#allocation5 + $0x1d8] sm:$0xff]
    %v913 = vld [vmem:[#allocation5 + $0x1e0] sm:$0xff]
    %v914 = vld [vmem:[#allocation5 + $0x1e8] sm:$0xff]
    %v915 = vld [vmem:[#allocation5 + $0x1f0] sm:$0xff]
    %v916 = vld [vmem:[#allocation5 + $0x1f8] sm:$0xff]
    %v917 = vld [vmem:[#allocation5 + $0x200] sm:$0xff]
    %v918 = vld [vmem:[#allocation5 + $0x208] sm:$0xff]
    %v919 = vld [vmem:[#allocation5 + $0x210] sm:$0xff]
    %v920 = vld [vmem:[#allocation5 + $0x218] sm:$0xff]
    %v921 = vld [vmem:[#allocation5 + $0x220] sm:$0xff]
    %v922 = vld [vmem:[#allocation5 + $0x228] sm:$0xff]
    %v923 = vld [vmem:[#allocation5 + $0x230] sm:$0xff]
    %v924 = vld [vmem:[#allocation5 + $0x238] sm:$0xff]
    %v925 = vld [vmem:[#allocation5 + $0x240] sm:$0xff]
    %v926 = vld [vmem:[#allocation5 + $0x248] sm:$0xff]
    %v927 = vld [vmem:[#allocation5 + $0x250] sm:$0xff]
    %v928 = vld [vmem:[#allocation5 + $0x258] sm:$0xff]
    %v929 = vld [vmem:[#allocation5 + $0x260] sm:$0xff]
    %v930 = vld [vmem:[#allocation5 + $0x268] sm:$0xff]
    %v931 = vld [vmem:[#allocation5 + $0x270] sm:$0xff]
    %v932 = vld [vmem:[#allocation5 + $0x278] sm:$0xff]
    %v933 = vld [vmem:[#allocation5 + $0x280] sm:$0xff]
    %v934 = vld [vmem:[#allocation5 + $0x288] sm:$0xff]
    %v935 = vld [vmem:[#allocation5 + $0x290] sm:$0xff]
    %v936 = vld [vmem:[#allocation5 + $0x298] sm:$0xff]
    %v937 = vld [vmem:[#allocation5 + $0x2a0] sm:$0xff]
    %v938 = vld [vmem:[#allocation5 + $0x2a8] sm:$0xff]
    %v939 = vld [vmem:[#allocation5 + $0x2b0] sm:$0xff]
    %v940 = vld [vmem:[#allocation5 + $0x2b8] sm:$0xff]
    %v941 = vld [vmem:[#allocation5 + $0x2c0] sm:$0xff]
    %v942 = vld [vmem:[#allocation5 + $0x2c8] sm:$0xff]
    %v943 = vld [vmem:[#allocation5 + $0x2d0] sm:$0xff]
    %v944 = vld [vmem:[#allocation5 + $0x2d8] sm:$0xff]
    %v945 = vld [vmem:[#allocation5 + $0x2e0] sm:$0xff]
    %v946 = vld [vmem:[#allocation5 + $0x2e8] sm:$0xff]
    %v947 = vld [vmem:[#allocation5 + $0x2f0] sm:$0xff]
    %v948 = vld [vmem:[#allocation5 + $0x2f8] sm:$0xff]
    %v949 = vld [vmem:[#allocation7] sm:$0x3f]
    %v951 = vlaneseq
    %v952 = vshrl.u32 %v951, 7
    %v953 = vsub.s32 0, %v952
    %v954 = vrot.slane %v949, %v953
    %v955 = vlaneseq
    %v956 = vshrl.u32 %v955, 7
    %v957 = vsub.s32 1, %v956
    %v958 = vrot.slane %v949, %v957
    %v959 = vlaneseq
    %v960 = vshrl.u32 %v959, 7
    %v961 = vsub.s32 2, %v960
    %v962 = vrot.slane %v949, %v961
    %v963 = vlaneseq
    %v964 = vshrl.u32 %v963, 7
    %v965 = vsub.s32 3, %v964
    %v966 = vrot.slane %v949, %v965
    %v967 = vlaneseq
    %v968 = vshrl.u32 %v967, 7
    %v969 = vsub.s32 4, %v968
    %v970 = vrot.slane %v949, %v969
    %v971 = vlaneseq
    %v972 = vshrl.u32 %v971, 7
    %v973 = vsub.s32 5, %v972
    %v974 = vrot.slane %v949, %v973
    %v1077 = vunpack.c.l.b16 %v853
    %v1078 = vunpack.c.h.b16 %v853
    %v1079 = vunpack.c.l.b16 %v854
    %v1080 = vunpack.c.h.b16 %v854
    %v1081 = vunpack.c.l.b16 %v855
    %v1082 = vunpack.c.h.b16 %v855
    %v1083 = vunpack.c.l.b16 %v856
    %v1084 = vunpack.c.h.b16 %v856
    %v1085 = vunpack.c.l.b16 %v857
    %v1086 = vunpack.c.h.b16 %v857
    %v1087 = vunpack.c.l.b16 %v858
    %v1088 = vunpack.c.h.b16 %v858
    %v1089 = vunpack.c.l.b16 %v859
    %v1090 = vunpack.c.h.b16 %v859
    %v1091 = vunpack.c.l.b16 %v860
    %v1092 = vunpack.c.h.b16 %v860
    %v1093 = vunpack.c.l.b16 %v861
    %v1094 = vunpack.c.h.b16 %v861
    %v1095 = vunpack.c.l.b16 %v862
    %v1096 = vunpack.c.h.b16 %v862
    %v1097 = vunpack.c.l.b16 %v863
    %v1098 = vunpack.c.h.b16 %v863
    %v1099 = vunpack.c.l.b16 %v864
    %v1100 = vunpack.c.h.b16 %v864
    %v1101 = vunpack.c.l.b16 %v865
    %v1102 = vunpack.c.h.b16 %v865
    %v1103 = vunpack.c.l.b16 %v866
    %v1104 = vunpack.c.h.b16 %v866
    %v1105 = vunpack.c.l.b16 %v867
    %v1106 = vunpack.c.h.b16 %v867
    %v1107 = vunpack.c.l.b16 %v868
    %v1108 = vunpack.c.h.b16 %v868
    %v1109 = vunpack.c.l.b16 %v869
    %v1110 = vunpack.c.h.b16 %v869
    %v1111 = vunpack.c.l.b16 %v870
    %v1112 = vunpack.c.h.b16 %v870
    %v1113 = vunpack.c.l.b16 %v871
    %v1114 = vunpack.c.h.b16 %v871
    %v1115 = vunpack.c.l.b16 %v872
    %v1116 = vunpack.c.h.b16 %v872
    %v1117 = vunpack.c.l.b16 %v873
    %v1118 = vunpack.c.h.b16 %v873
    %v1119 = vunpack.c.l.b16 %v874
    %v1120 = vunpack.c.h.b16 %v874
    %v1121 = vunpack.c.l.b16 %v875
    %v1122 = vunpack.c.h.b16 %v875
    %v1123 = vunpack.c.l.b16 %v876
    %v1124 = vunpack.c.h.b16 %v876
    %v1125 = vunpack.c.l.b16 %v877
    %v1126 = vunpack.c.h.b16 %v877
    %v1127 = vunpack.c.l.b16 %v878
    %v1128 = vunpack.c.h.b16 %v878
    %v1129 = vunpack.c.l.b16 %v879
    %v1130 = vunpack.c.h.b16 %v879
    %v1131 = vunpack.c.l.b16 %v880
    %v1132 = vunpack.c.h.b16 %v880
    %v1133 = vunpack.c.l.b16 %v881
    %v1134 = vunpack.c.h.b16 %v881
    %v1135 = vunpack.c.l.b16 %v882
    %v1136 = vunpack.c.h.b16 %v882
    %v1137 = vunpack.c.l.b16 %v883
    %v1138 = vunpack.c.h.b16 %v883
    %v1139 = vunpack.c.l.b16 %v884
    %v1140 = vunpack.c.h.b16 %v884
    %v1141 = vunpack.c.l.b16 %v885
    %v1142 = vunpack.c.h.b16 %v885
    %v1143 = vunpack.c.l.b16 %v886
    %v1144 = vunpack.c.h.b16 %v886
    %v1145 = vunpack.c.l.b16 %v887
    %v1146 = vunpack.c.h.b16 %v887
    %v1147 = vunpack.c.l.b16 %v888
    %v1148 = vunpack.c.h.b16 %v888
    %v1149 = vunpack.c.l.b16 %v889
    %v1150 = vunpack.c.h.b16 %v889
    %v1151 = vunpack.c.l.b16 %v890
    %v1152 = vunpack.c.h.b16 %v890
    %v1153 = vunpack.c.l.b16 %v891
    %v1154 = vunpack.c.h.b16 %v891
    %v1155 = vunpack.c.l.b16 %v892
    %v1156 = vunpack.c.h.b16 %v892
    %v1157 = vunpack.c.l.b16 %v893
    %v1158 = vunpack.c.h.b16 %v893
    %v1159 = vunpack.c.l.b16 %v894
    %v1160 = vunpack.c.h.b16 %v894
    %v1161 = vunpack.c.l.b16 %v895
    %v1162 = vunpack.c.h.b16 %v895
    %v1163 = vunpack.c.l.b16 %v896
    %v1164 = vunpack.c.h.b16 %v896
    %v1165 = vunpack.c.l.b16 %v897
    %v1166 = vunpack.c.h.b16 %v897
    %v1167 = vunpack.c.l.b16 %v898
    %v1168 = vunpack.c.h.b16 %v898
    %v1169 = vunpack.c.l.b16 %v899
    %v1170 = vunpack.c.h.b16 %v899
    %v1171 = vunpack.c.l.b16 %v900
    %v1172 = vunpack.c.h.b16 %v900
    %v1173 = vunpack.c.l.b16 %v901
    %v1174 = vunpack.c.h.b16 %v901
    %v1175 = vunpack.c.l.b16 %v902
    %v1176 = vunpack.c.h.b16 %v902
    %v1177 = vunpack.c.l.b16 %v903
    %v1178 = vunpack.c.h.b16 %v903
    %v1179 = vunpack.c.l.b16 %v904
    %v1180 = vunpack.c.h.b16 %v904
    %v1181 = vunpack.c.l.b16 %v905
    %v1182 = vunpack.c.h.b16 %v905
    %v1183 = vunpack.c.l.b16 %v906
    %v1184 = vunpack.c.h.b16 %v906
    %v1185 = vunpack.c.l.b16 %v907
    %v1186 = vunpack.c.h.b16 %v907
    %v1187 = vunpack.c.l.b16 %v908
    %v1188 = vunpack.c.h.b16 %v908
    %v1189 = vunpack.c.l.b16 %v909
    %v1190 = vunpack.c.h.b16 %v909
    %v1191 = vunpack.c.l.b16 %v910
    %v1192 = vunpack.c.h.b16 %v910
    %v1193 = vunpack.c.l.b16 %v911
    %v1194 = vunpack.c.h.b16 %v911
    %v1195 = vunpack.c.l.b16 %v912
    %v1196 = vunpack.c.h.b16 %v912
    %v1197 = vunpack.c.l.b16 %v913
    %v1198 = vunpack.c.h.b16 %v913
    %v1199 = vunpack.c.l.b16 %v914
    %v1200 = vunpack.c.h.b16 %v914
    %v1201 = vunpack.c.l.b16 %v915
    %v1202 = vunpack.c.h.b16 %v915
    %v1203 = vunpack.c.l.b16 %v916
    %v1204 = vunpack.c.h.b16 %v916
    %v1205 = vunpack.c.l.b16 %v917
    %v1206 = vunpack.c.h.b16 %v917
    %v1207 = vunpack.c.l.b16 %v918
    %v1208 = vunpack.c.h.b16 %v918
    %v1209 = vunpack.c.l.b16 %v919
    %v1210 = vunpack.c.h.b16 %v919
    %v1211 = vunpack.c.l.b16 %v920
    %v1212 = vunpack.c.h.b16 %v920
    %v1213 = vunpack.c.l.b16 %v921
    %v1214 = vunpack.c.h.b16 %v921
    %v1215 = vunpack.c.l.b16 %v922
    %v1216 = vunpack.c.h.b16 %v922
    %v1217 = vunpack.c.l.b16 %v923
    %v1218 = vunpack.c.h.b16 %v923
    %v1219 = vunpack.c.l.b16 %v924
    %v1220 = vunpack.c.h.b16 %v924
    %v1221 = vunpack.c.l.b16 %v925
    %v1222 = vunpack.c.h.b16 %v925
    %v1223 = vunpack.c.l.b16 %v926
    %v1224 = vunpack.c.h.b16 %v926
    %v1225 = vunpack.c.l.b16 %v927
    %v1226 = vunpack.c.h.b16 %v927
    %v1227 = vunpack.c.l.b16 %v928
    %v1228 = vunpack.c.h.b16 %v928
    %v1229 = vunpack.c.l.b16 %v929
    %v1230 = vunpack.c.h.b16 %v929
    %v1231 = vunpack.c.l.b16 %v930
    %v1232 = vunpack.c.h.b16 %v930
    %v1233 = vunpack.c.l.b16 %v931
    %v1234 = vunpack.c.h.b16 %v931
    %v1235 = vunpack.c.l.b16 %v932
    %v1236 = vunpack.c.h.b16 %v932
    %v1237 = vunpack.c.l.b16 %v933
    %v1238 = vunpack.c.h.b16 %v933
    %v1239 = vunpack.c.l.b16 %v934
    %v1240 = vunpack.c.h.b16 %v934
    %v1241 = vunpack.c.l.b16 %v935
    %v1242 = vunpack.c.h.b16 %v935
    %v1243 = vunpack.c.l.b16 %v936
    %v1244 = vunpack.c.h.b16 %v936
    %v1245 = vunpack.c.l.b16 %v937
    %v1246 = vunpack.c.h.b16 %v937
    %v1247 = vunpack.c.l.b16 %v938
    %v1248 = vunpack.c.h.b16 %v938
    %v1249 = vunpack.c.l.b16 %v939
    %v1250 = vunpack.c.h.b16 %v939
    %v1251 = vunpack.c.l.b16 %v940
    %v1252 = vunpack.c.h.b16 %v940
    %v1253 = vunpack.c.l.b16 %v941
    %v1254 = vunpack.c.h.b16 %v941
    %v1255 = vunpack.c.l.b16 %v942
    %v1256 = vunpack.c.h.b16 %v942
    %v1257 = vunpack.c.l.b16 %v943
    %v1258 = vunpack.c.h.b16 %v943
    %v1259 = vunpack.c.l.b16 %v944
    %v1260 = vunpack.c.h.b16 %v944
    %v1261 = vunpack.c.l.b16 %v945
    %v1262 = vunpack.c.h.b16 %v945
    %v1263 = vunpack.c.l.b16 %v946
    %v1264 = vunpack.c.h.b16 %v946
    %v1265 = vunpack.c.l.b16 %v947
    %v1266 = vunpack.c.h.b16 %v947
    %v1267 = vunpack.c.l.b16 %v948
    %v1268 = vunpack.c.h.b16 %v948
    %v1269 = vpack.c.b16 %v1083, %v1077
    %v1270 = vpack.c.b16 %v1084, %v1078
    %v1271 = vpack.c.b16 %v1085, %v1079
    %v1272 = vpack.c.b16 %v1086, %v1080
    %v1273 = vpack.c.b16 %v1087, %v1081
    %v1274 = vpack.c.b16 %v1088, %v1082
    %v1275 = vpack.c.b16 %v1095, %v1089
    %v1276 = vpack.c.b16 %v1096, %v1090
    %v1277 = vpack.c.b16 %v1097, %v1091
    %v1278 = vpack.c.b16 %v1098, %v1092
    %v1279 = vpack.c.b16 %v1099, %v1093
    %v1280 = vpack.c.b16 %v1100, %v1094
    %v1281 = vpack.c.b16 %v1107, %v1101
    %v1282 = vpack.c.b16 %v1108, %v1102
    %v1283 = vpack.c.b16 %v1109, %v1103
    %v1284 = vpack.c.b16 %v1110, %v1104
    %v1285 = vpack.c.b16 %v1111, %v1105
    %v1286 = vpack.c.b16 %v1112, %v1106
    %v1287 = vpack.c.b16 %v1119, %v1113
    %v1288 = vpack.c.b16 %v1120, %v1114
    %v1289 = vpack.c.b16 %v1121, %v1115
    %v1290 = vpack.c.b16 %v1122, %v1116
    %v1291 = vpack.c.b16 %v1123, %v1117
    %v1292 = vpack.c.b16 %v1124, %v1118
    %v1293 = vpack.c.b16 %v1131, %v1125
    %v1294 = vpack.c.b16 %v1132, %v1126
    %v1295 = vpack.c.b16 %v1133, %v1127
    %v1296 = vpack.c.b16 %v1134, %v1128
    %v1297 = vpack.c.b16 %v1135, %v1129
    %v1298 = vpack.c.b16 %v1136, %v1130
    %v1299 = vpack.c.b16 %v1143, %v1137
    %v1300 = vpack.c.b16 %v1144, %v1138
    %v1301 = vpack.c.b16 %v1145, %v1139
    %v1302 = vpack.c.b16 %v1146, %v1140
    %v1303 = vpack.c.b16 %v1147, %v1141
    %v1304 = vpack.c.b16 %v1148, %v1142
    %v1305 = vpack.c.b16 %v1155, %v1149
    %v1306 = vpack.c.b16 %v1156, %v1150
    %v1307 = vpack.c.b16 %v1157, %v1151
    %v1308 = vpack.c.b16 %v1158, %v1152
    %v1309 = vpack.c.b16 %v1159, %v1153
    %v1310 = vpack.c.b16 %v1160, %v1154
    %v1311 = vpack.c.b16 %v1167, %v1161
    %v1312 = vpack.c.b16 %v1168, %v1162
    %v1313 = vpack.c.b16 %v1169, %v1163
    %v1314 = vpack.c.b16 %v1170, %v1164
    %v1315 = vpack.c.b16 %v1171, %v1165
    %v1316 = vpack.c.b16 %v1172, %v1166
    %v1317 = vpack.c.b16 %v1179, %v1173
    %v1318 = vpack.c.b16 %v1180, %v1174
    %v1319 = vpack.c.b16 %v1181, %v1175
    %v1320 = vpack.c.b16 %v1182, %v1176
    %v1321 = vpack.c.b16 %v1183, %v1177
    %v1322 = vpack.c.b16 %v1184, %v1178
    %v1323 = vpack.c.b16 %v1191, %v1185
    %v1324 = vpack.c.b16 %v1192, %v1186
    %v1325 = vpack.c.b16 %v1193, %v1187
    %v1326 = vpack.c.b16 %v1194, %v1188
    %v1327 = vpack.c.b16 %v1195, %v1189
    %v1328 = vpack.c.b16 %v1196, %v1190
    %v1329 = vpack.c.b16 %v1203, %v1197
    %v1330 = vpack.c.b16 %v1204, %v1198
    %v1331 = vpack.c.b16 %v1205, %v1199
    %v1332 = vpack.c.b16 %v1206, %v1200
    %v1333 = vpack.c.b16 %v1207, %v1201
    %v1334 = vpack.c.b16 %v1208, %v1202
    %v1335 = vpack.c.b16 %v1215, %v1209
    %v1336 = vpack.c.b16 %v1216, %v1210
    %v1337 = vpack.c.b16 %v1217, %v1211
    %v1338 = vpack.c.b16 %v1218, %v1212
    %v1339 = vpack.c.b16 %v1219, %v1213
    %v1340 = vpack.c.b16 %v1220, %v1214
    %v1341 = vpack.c.b16 %v1227, %v1221
    %v1342 = vpack.c.b16 %v1228, %v1222
    %v1343 = vpack.c.b16 %v1229, %v1223
    %v1344 = vpack.c.b16 %v1230, %v1224
    %v1345 = vpack.c.b16 %v1231, %v1225
    %v1346 = vpack.c.b16 %v1232, %v1226
    %v1347 = vpack.c.b16 %v1239, %v1233
    %v1348 = vpack.c.b16 %v1240, %v1234
    %v1349 = vpack.c.b16 %v1241, %v1235
    %v1350 = vpack.c.b16 %v1242, %v1236
    %v1351 = vpack.c.b16 %v1243, %v1237
    %v1352 = vpack.c.b16 %v1244, %v1238
    %v1353 = vpack.c.b16 %v1251, %v1245
    %v1354 = vpack.c.b16 %v1252, %v1246
    %v1355 = vpack.c.b16 %v1253, %v1247
    %v1356 = vpack.c.b16 %v1254, %v1248
    %v1357 = vpack.c.b16 %v1255, %v1249
    %v1358 = vpack.c.b16 %v1256, %v1250
    %v1359 = vpack.c.b16 %v1263, %v1257
    %v1360 = vpack.c.b16 %v1264, %v1258
    %v1361 = vpack.c.b16 %v1265, %v1259
    %v1362 = vpack.c.b16 %v1266, %v1260
    %v1363 = vpack.c.b16 %v1267, %v1261
    %v1364 = vpack.c.b16 %v1268, %v1262
    %1461 = vmatprep.subr.bf16.mxu0 %v1312
    %1462 = vmatpush1.bf16.msra.mxu0 %v1311
    %1463 = vmatprep.subr.bf16.mxu0 %v1306
    %1464 = vmatpush1.bf16.msra.mxu0 %v1305
    %1465 = vmatprep.subr.bf16.mxu0 %v1300
    %1466 = vmatpush1.bf16.msra.mxu0 %v1299
    %1467 = vmatprep.subr.bf16.mxu0 %v1294
    %1468 = vmatpush1.bf16.msra.mxu0 %v1293
    %1469 = vmatprep.subr.bf16.mxu0 %v1288
    %1470 = vmatpush1.bf16.msra.mxu0 %v1287
    %1471 = vmatprep.subr.bf16.mxu0 %v1282
    %1472 = vmatpush1.bf16.msra.mxu0 %v1281
    %1473 = vmatprep.subr.bf16.mxu0 %v1276
    %1474 = vmatpush1.bf16.msra.mxu0 %v1275
    %1475 = vmatprep.subr.bf16.mxu0 %v1270
    %1476 = vmatpush1.bf16.msra.mxu0 %v1269
    %1477 = vmatprep.subr.bf16.mxu0 %v1360
    %1478 = vmatpush2.bf16.msra.mxu0 %v1359
    %1479 = vmatprep.subr.bf16.mxu0 %v1354
    %1480 = vmatpush2.bf16.msra.mxu0 %v1353
    %1481 = vmatprep.subr.bf16.mxu0 %v1348
    %1482 = vmatpush2.bf16.msra.mxu0 %v1347
    %1483 = vmatprep.subr.bf16.mxu0 %v1342
    %1484 = vmatpush2.bf16.msra.mxu0 %v1341
    %1485 = vmatprep.subr.bf16.mxu0 %v1336
    %1486 = vmatpush2.bf16.msra.mxu0 %v1335
    %1487 = vmatprep.subr.bf16.mxu0 %v1330
    %1488 = vmatpush2.bf16.msra.mxu0 %v1329
    %1489 = vmatprep.subr.bf16.mxu0 %v1324
    %1490 = vmatpush2.bf16.msra.mxu0 %v1323
    %1491 = vmatprep.subr.bf16.mxu0 %v1318
    %1492 = vmatpush2.bf16.msra.mxu0 %v1317
    %1493 = vmatprep.mubr.bf16.mxu0 %v822
    %1494 = vmatmul.mubr.bf16.gmra.mxu0 %v821
    %v1495 = vpop.f32.mrf.mxu0
    %v1496 = vadd.f32 %v954, %v1495
    %v1497 = vpop.f32.mrf.mxu0
    %v1498 = vadd.f32 %v958, %v1497
    %v1499 = vpop.f32.mrf.mxu0
    %v1500 = vadd.f32 %v954, %v1499
    %v1501 = vpop.f32.mrf.mxu0
    %v1502 = vadd.f32 %v958, %v1501
    %1503 = vmatprep.mubr.bf16.mxu0 %v824
    %1504 = vmatmul.mubr.bf16.gmra.mxu0 %v823
    %v1505 = vpop.f32.mrf.mxu0
    %v1506 = vadd.f32 %v954, %v1505
    %v1507 = vpop.f32.mrf.mxu0
    %v1508 = vadd.f32 %v958, %v1507
    %v1509 = vpop.f32.mrf.mxu0
    %v1510 = vadd.f32 %v954, %v1509
    %v1511 = vpop.f32.mrf.mxu0
    %v1512 = vadd.f32 %v958, %v1511
    %1513 = vmatprep.mubr.bf16.mxu0 %v826
    %1514 = vmatmul.mubr.bf16.gmra.mxu0 %v825
    %v1515 = vpop.f32.mrf.mxu0
    %v1516 = vadd.f32 %v954, %v1515
    %v1517 = vpop.f32.mrf.mxu0
    %v1518 = vadd.f32 %v958, %v1517
    %v1519 = vpop.f32.mrf.mxu0
    %v1520 = vadd.f32 %v954, %v1519
    %v1521 = vpop.f32.mrf.mxu0
    %v1522 = vadd.f32 %v958, %v1521
    %1523 = vmatprep.mubr.bf16.mxu0 %v828
    %1524 = vmatmul.mubr.bf16.gmra.mxu0 %v827
    %v1525 = vpop.f32.mrf.mxu0
    %v1526 = vadd.f32 %v954, %v1525
    %v1527 = vpop.f32.mrf.mxu0
    %v1528 = vadd.f32 %v958, %v1527
    %v1529 = vpop.f32.mrf.mxu0
    %v1530 = vadd.f32 %v954, %v1529
    %v1531 = vpop.f32.mrf.mxu0
    %v1532 = vadd.f32 %v958, %v1531
    %1533 = vmatprep.mubr.bf16.mxu0 %v830
    %1534 = vmatmul.mubr.bf16.gmra.mxu0 %v829
    %v1535 = vpop.f32.mrf.mxu0
    %v1536 = vadd.f32 %v954, %v1535
    %v1537 = vpop.f32.mrf.mxu0
    %v1538 = vadd.f32 %v958, %v1537
    %v1539 = vpop.f32.mrf.mxu0
    %v1540 = vadd.f32 %v954, %v1539
    %v1541 = vpop.f32.mrf.mxu0
    %v1542 = vadd.f32 %v958, %v1541
    %1543 = vmatprep.mubr.bf16.mxu0 %v832
    %1544 = vmatmul.mubr.bf16.gmra.mxu0 %v831
    %v1545 = vpop.f32.mrf.mxu0
    %v1546 = vadd.f32 %v954, %v1545
    %v1547 = vpop.f32.mrf.mxu0
    %v1548 = vadd.f32 %v958, %v1547
    %v1549 = vpop.f32.mrf.mxu0
    %v1550 = vadd.f32 %v954, %v1549
    %v1551 = vpop.f32.mrf.mxu0
    %v1552 = vadd.f32 %v958, %v1551
    %1553 = vmatprep.mubr.bf16.mxu0 %v834
    %1554 = vmatmul.mubr.bf16.gmra.mxu0 %v833
    %v1555 = vpop.f32.mrf.mxu0
    %v1556 = vadd.f32 %v954, %v1555
    %v1557 = vpop.f32.mrf.mxu0
    %v1558 = vadd.f32 %v958, %v1557
    %v1559 = vpop.f32.mrf.mxu0
    %v1560 = vadd.f32 %v954, %v1559
    %v1561 = vpop.f32.mrf.mxu0
    %v1562 = vadd.f32 %v958, %v1561
    %1563 = vmatprep.mubr.bf16.mxu0 %v836
    %1564 = vmatmul.mubr.bf16.gmra.mxu0 %v835
    %v1565 = vpop.f32.mrf.mxu0
    %v1566 = vadd.f32 %v954, %v1565
    %v1567 = vpop.f32.mrf.mxu0
    %v1568 = vadd.f32 %v958, %v1567
    %v1569 = vpop.f32.mrf.mxu0
    %v1570 = vadd.f32 %v954, %v1569
    %v1571 = vpop.f32.mrf.mxu0
    %v1572 = vadd.f32 %v958, %v1571
    %1573 = vmatprep.mubr.bf16.mxu0 %v838
    %1574 = vmatmul.mubr.bf16.gmra.mxu0 %v837
    %v1575 = vpop.f32.mrf.mxu0
    %v1576 = vadd.f32 %v954, %v1575
    %v1577 = vpop.f32.mrf.mxu0
    %v1578 = vadd.f32 %v958, %v1577
    %v1579 = vpop.f32.mrf.mxu0
    %v1580 = vadd.f32 %v954, %v1579
    %v1581 = vpop.f32.mrf.mxu0
    %v1582 = vadd.f32 %v958, %v1581
    %1583 = vmatprep.mubr.bf16.mxu0 %v840
    %1584 = vmatmul.mubr.bf16.gmra.mxu0 %v839
    %v1585 = vpop.f32.mrf.mxu0
    %v1586 = vadd.f32 %v954, %v1585
    %v1587 = vpop.f32.mrf.mxu0
    %v1588 = vadd.f32 %v958, %v1587
    %v1589 = vpop.f32.mrf.mxu0
    %v1590 = vadd.f32 %v954, %v1589
    %v1591 = vpop.f32.mrf.mxu0
    %v1592 = vadd.f32 %v958, %v1591
    %1593 = vmatprep.mubr.bf16.mxu0 %v842
    %1594 = vmatmul.mubr.bf16.gmra.mxu0 %v841
    %v1595 = vpop.f32.mrf.mxu0
    %v1596 = vadd.f32 %v954, %v1595
    %v1597 = vpop.f32.mrf.mxu0
    %v1598 = vadd.f32 %v958, %v1597
    %v1599 = vpop.f32.mrf.mxu0
    %v1600 = vadd.f32 %v954, %v1599
    %v1601 = vpop.f32.mrf.mxu0
    %v1602 = vadd.f32 %v958, %v1601
    %1603 = vmatprep.mubr.bf16.mxu0 %v844
    %1604 = vmatmul.mubr.bf16.gmra.mxu0 %v843
    %v1605 = vpop.f32.mrf.mxu0
    %v1606 = vadd.f32 %v954, %v1605
    %v1607 = vpop.f32.mrf.mxu0
    %v1608 = vadd.f32 %v958, %v1607
    %v1609 = vpop.f32.mrf.mxu0
    %v1610 = vadd.f32 %v954, %v1609
    %v1611 = vpop.f32.mrf.mxu0
    %v1612 = vadd.f32 %v958, %v1611
    %1613 = vmatprep.mubr.bf16.mxu0 %v846
    %1614 = vmatmul.mubr.bf16.gmra.mxu0 %v845
    %v1615 = vpop.f32.mrf.mxu0
    %v1616 = vadd.f32 %v954, %v1615
    %v1617 = vpop.f32.mrf.mxu0
    %v1618 = vadd.f32 %v958, %v1617
    %v1619 = vpop.f32.mrf.mxu0
    %v1620 = vadd.f32 %v954, %v1619
    %v1621 = vpop.f32.mrf.mxu0
    %v1622 = vadd.f32 %v958, %v1621
    %1623 = vmatprep.mubr.bf16.mxu0 %v848
    %1624 = vmatmul.mubr.bf16.gmra.mxu0 %v847
    %v1625 = vpop.f32.mrf.mxu0
    %v1626 = vadd.f32 %v954, %v1625
    %v1627 = vpop.f32.mrf.mxu0
    %v1628 = vadd.f32 %v958, %v1627
    %v1629 = vpop.f32.mrf.mxu0
    %v1630 = vadd.f32 %v954, %v1629
    %v1631 = vpop.f32.mrf.mxu0
    %v1632 = vadd.f32 %v958, %v1631
    %1633 = vmatprep.mubr.bf16.mxu0 %v850
    %1634 = vmatmul.mubr.bf16.gmra.mxu0 %v849
    %v1635 = vpop.f32.mrf.mxu0
    %v1636 = vadd.f32 %v954, %v1635
    %v1637 = vpop.f32.mrf.mxu0
    %v1638 = vadd.f32 %v958, %v1637
    %v1639 = vpop.f32.mrf.mxu0
    %v1640 = vadd.f32 %v954, %v1639
    %v1641 = vpop.f32.mrf.mxu0
    %v1642 = vadd.f32 %v958, %v1641
    %1643 = vmatprep.mubr.bf16.mxu0 %v852
    %1644 = vmatmul.mubr.bf16.gmra.mxu0 %v851
    %v1645 = vpop.f32.mrf.mxu0
    %v1646 = vadd.f32 %v954, %v1645
    %v1647 = vpop.f32.mrf.mxu0
    %v1648 = vadd.f32 %v958, %v1647
    %v1649 = vpop.f32.mrf.mxu0
    %v1650 = vadd.f32 %v954, %v1649
    %v1651 = vpop.f32.mrf.mxu0
    %v1652 = vadd.f32 %v958, %v1651
    %1653 = vdwg.mxu0
    %1654 = vmatprep.subr.bf16.mxu0 %v1314
    %1655 = vmatpush1.bf16.msra.mxu0 %v1313
    %1656 = vmatprep.subr.bf16.mxu0 %v1308
    %1657 = vmatpush1.bf16.msra.mxu0 %v1307
    %1658 = vmatprep.subr.bf16.mxu0 %v1302
    %1659 = vmatpush1.bf16.msra.mxu0 %v1301
    %1660 = vmatprep.subr.bf16.mxu0 %v1296
    %1661 = vmatpush1.bf16.msra.mxu0 %v1295
    %1662 = vmatprep.subr.bf16.mxu0 %v1290
    %1663 = vmatpush1.bf16.msra.mxu0 %v1289
    %1664 = vmatprep.subr.bf16.mxu0 %v1284
    %1665 = vmatpush1.bf16.msra.mxu0 %v1283
    %1666 = vmatprep.subr.bf16.mxu0 %v1278
    %1667 = vmatpush1.bf16.msra.mxu0 %v1277
    %1668 = vmatprep.subr.bf16.mxu0 %v1272
    %1669 = vmatpush1.bf16.msra.mxu0 %v1271
    %1670 = vmatprep.subr.bf16.mxu0 %v1362
    %1671 = vmatpush2.bf16.msra.mxu0 %v1361
    %1672 = vmatprep.subr.bf16.mxu0 %v1356
    %1673 = vmatpush2.bf16.msra.mxu0 %v1355
    %1674 = vmatprep.subr.bf16.mxu0 %v1350
    %1675 = vmatpush2.bf16.msra.mxu0 %v1349
    %1676 = vmatprep.subr.bf16.mxu0 %v1344
    %1677 = vmatpush2.bf16.msra.mxu0 %v1343
    %1678 = vmatprep.subr.bf16.mxu0 %v1338
    %1679 = vmatpush2.bf16.msra.mxu0 %v1337
    %1680 = vmatprep.subr.bf16.mxu0 %v1332
    %1681 = vmatpush2.bf16.msra.mxu0 %v1331
    %1682 = vmatprep.subr.bf16.mxu0 %v1326
    %1683 = vmatpush2.bf16.msra.mxu0 %v1325
    %1684 = vmatprep.subr.bf16.mxu0 %v1320
    %1685 = vmatpush2.bf16.msra.mxu0 %v1319
    %1686 = vmatprep.mubr.bf16.mxu0 %v822
    %1687 = vmatmul.mubr.bf16.gmra.mxu0 %v821
    %v1688 = vpop.f32.mrf.mxu0
    %v1689 = vadd.f32 %v962, %v1688
    %v1690 = vpop.f32.mrf.mxu0
    %v1691 = vadd.f32 %v966, %v1690
    %v1692 = vpop.f32.mrf.mxu0
    %v1693 = vadd.f32 %v962, %v1692
    %v1694 = vpop.f32.mrf.mxu0
    %v1695 = vadd.f32 %v966, %v1694
    %1696 = vmatprep.mubr.bf16.mxu0 %v824
    %1697 = vmatmul.mubr.bf16.gmra.mxu0 %v823
    %v1698 = vpop.f32.mrf.mxu0
    %v1699 = vadd.f32 %v962, %v1698
    %v1700 = vpop.f32.mrf.mxu0
    %v1701 = vadd.f32 %v966, %v1700
    %v1702 = vpop.f32.mrf.mxu0
    %v1703 = vadd.f32 %v962, %v1702
    %v1704 = vpop.f32.mrf.mxu0
    %v1705 = vadd.f32 %v966, %v1704
    %1706 = vmatprep.mubr.bf16.mxu0 %v826
    %1707 = vmatmul.mubr.bf16.gmra.mxu0 %v825
    %v1708 = vpop.f32.mrf.mxu0
    %v1709 = vadd.f32 %v962, %v1708
    %v1710 = vpop.f32.mrf.mxu0
    %v1711 = vadd.f32 %v966, %v1710
    %v1712 = vpop.f32.mrf.mxu0
    %v1713 = vadd.f32 %v962, %v1712
    %v1714 = vpop.f32.mrf.mxu0
    %v1715 = vadd.f32 %v966, %v1714
    %1716 = vmatprep.mubr.bf16.mxu0 %v828
    %1717 = vmatmul.mubr.bf16.gmra.mxu0 %v827
    %v1718 = vpop.f32.mrf.mxu0
    %v1719 = vadd.f32 %v962, %v1718
    %v1720 = vpop.f32.mrf.mxu0
    %v1721 = vadd.f32 %v966, %v1720
    %v1722 = vpop.f32.mrf.mxu0
    %v1723 = vadd.f32 %v962, %v1722
    %v1724 = vpop.f32.mrf.mxu0
    %v1725 = vadd.f32 %v966, %v1724
    %1726 = vmatprep.mubr.bf16.mxu0 %v830
    %1727 = vmatmul.mubr.bf16.gmra.mxu0 %v829
    %v1728 = vpop.f32.mrf.mxu0
    %v1729 = vadd.f32 %v962, %v1728
    %v1730 = vpop.f32.mrf.mxu0
    %v1731 = vadd.f32 %v966, %v1730
    %v1732 = vpop.f32.mrf.mxu0
    %v1733 = vadd.f32 %v962, %v1732
    %v1734 = vpop.f32.mrf.mxu0
    %v1735 = vadd.f32 %v966, %v1734
    %1736 = vmatprep.mubr.bf16.mxu0 %v832
    %1737 = vmatmul.mubr.bf16.gmra.mxu0 %v831
    %v1738 = vpop.f32.mrf.mxu0
    %v1739 = vadd.f32 %v962, %v1738
    %v1740 = vpop.f32.mrf.mxu0
    %v1741 = vadd.f32 %v966, %v1740
    %v1742 = vpop.f32.mrf.mxu0
    %v1743 = vadd.f32 %v962, %v1742
    %v1744 = vpop.f32.mrf.mxu0
    %v1745 = vadd.f32 %v966, %v1744
    %1746 = vmatprep.mubr.bf16.mxu0 %v834
    %1747 = vmatmul.mubr.bf16.gmra.mxu0 %v833
    %v1748 = vpop.f32.mrf.mxu0
    %v1749 = vadd.f32 %v962, %v1748
    %v1750 = vpop.f32.mrf.mxu0
    %v1751 = vadd.f32 %v966, %v1750
    %v1752 = vpop.f32.mrf.mxu0
    %v1753 = vadd.f32 %v962, %v1752
    %v1754 = vpop.f32.mrf.mxu0
    %v1755 = vadd.f32 %v966, %v1754
    %1756 = vmatprep.mubr.bf16.mxu0 %v836
    %1757 = vmatmul.mubr.bf16.gmra.mxu0 %v835
    %v1758 = vpop.f32.mrf.mxu0
    %v1759 = vadd.f32 %v962, %v1758
    %v1760 = vpop.f32.mrf.mxu0
    %v1761 = vadd.f32 %v966, %v1760
    %v1762 = vpop.f32.mrf.mxu0
    %v1763 = vadd.f32 %v962, %v1762
    %v1764 = vpop.f32.mrf.mxu0
    %v1765 = vadd.f32 %v966, %v1764
    %1766 = vmatprep.mubr.bf16.mxu0 %v838
    %1767 = vmatmul.mubr.bf16.gmra.mxu0 %v837
    %v1768 = vpop.f32.mrf.mxu0
    %v1769 = vadd.f32 %v962, %v1768
    %v1770 = vpop.f32.mrf.mxu0
    %v1771 = vadd.f32 %v966, %v1770
    %v1772 = vpop.f32.mrf.mxu0
    %v1773 = vadd.f32 %v962, %v1772
    %v1774 = vpop.f32.mrf.mxu0
    %v1775 = vadd.f32 %v966, %v1774
    %1776 = vmatprep.mubr.bf16.mxu0 %v840
    %1777 = vmatmul.mubr.bf16.gmra.mxu0 %v839
    %v1778 = vpop.f32.mrf.mxu0
    %v1779 = vadd.f32 %v962, %v1778
    %v1780 = vpop.f32.mrf.mxu0
    %v1781 = vadd.f32 %v966, %v1780
    %v1782 = vpop.f32.mrf.mxu0
    %v1783 = vadd.f32 %v962, %v1782
    %v1784 = vpop.f32.mrf.mxu0
    %v1785 = vadd.f32 %v966, %v1784
    %1786 = vmatprep.mubr.bf16.mxu0 %v842
    %1787 = vmatmul.mubr.bf16.gmra.mxu0 %v841
    %v1788 = vpop.f32.mrf.mxu0
    %v1789 = vadd.f32 %v962, %v1788
    %v1790 = vpop.f32.mrf.mxu0
    %v1791 = vadd.f32 %v966, %v1790
    %v1792 = vpop.f32.mrf.mxu0
    %v1793 = vadd.f32 %v962, %v1792
    %v1794 = vpop.f32.mrf.mxu0
    %v1795 = vadd.f32 %v966, %v1794
    %1796 = vmatprep.mubr.bf16.mxu0 %v844
    %1797 = vmatmul.mubr.bf16.gmra.mxu0 %v843
    %v1798 = vpop.f32.mrf.mxu0
    %v1799 = vadd.f32 %v962, %v1798
    %v1800 = vpop.f32.mrf.mxu0
    %v1801 = vadd.f32 %v966, %v1800
    %v1802 = vpop.f32.mrf.mxu0
    %v1803 = vadd.f32 %v962, %v1802
    %v1804 = vpop.f32.mrf.mxu0
    %v1805 = vadd.f32 %v966, %v1804
    %1806 = vmatprep.mubr.bf16.mxu0 %v846
    %1807 = vmatmul.mubr.bf16.gmra.mxu0 %v845
    %v1808 = vpop.f32.mrf.mxu0
    %v1809 = vadd.f32 %v962, %v1808
    %v1810 = vpop.f32.mrf.mxu0
    %v1811 = vadd.f32 %v966, %v1810
    %v1812 = vpop.f32.mrf.mxu0
    %v1813 = vadd.f32 %v962, %v1812
    %v1814 = vpop.f32.mrf.mxu0
    %v1815 = vadd.f32 %v966, %v1814
    %1816 = vmatprep.mubr.bf16.mxu0 %v848
    %1817 = vmatmul.mubr.bf16.gmra.mxu0 %v847
    %v1818 = vpop.f32.mrf.mxu0
    %v1819 = vadd.f32 %v962, %v1818
    %v1820 = vpop.f32.mrf.mxu0
    %v1821 = vadd.f32 %v966, %v1820
    %v1822 = vpop.f32.mrf.mxu0
    %v1823 = vadd.f32 %v962, %v1822
    %v1824 = vpop.f32.mrf.mxu0
    %v1825 = vadd.f32 %v966, %v1824
    %1826 = vmatprep.mubr.bf16.mxu0 %v850
    %1827 = vmatmul.mubr.bf16.gmra.mxu0 %v849
    %v1828 = vpop.f32.mrf.mxu0
    %v1829 = vadd.f32 %v962, %v1828
    %v1830 = vpop.f32.mrf.mxu0
    %v1831 = vadd.f32 %v966, %v1830
    %v1832 = vpop.f32.mrf.mxu0
    %v1833 = vadd.f32 %v962, %v1832
    %v1834 = vpop.f32.mrf.mxu0
    %v1835 = vadd.f32 %v966, %v1834
    %1836 = vmatprep.mubr.bf16.mxu0 %v852
    %1837 = vmatmul.mubr.bf16.gmra.mxu0 %v851
    %v1838 = vpop.f32.mrf.mxu0
    %v1839 = vadd.f32 %v962, %v1838
    %v1840 = vpop.f32.mrf.mxu0
    %v1841 = vadd.f32 %v966, %v1840
    %v1842 = vpop.f32.mrf.mxu0
    %v1843 = vadd.f32 %v962, %v1842
    %v1844 = vpop.f32.mrf.mxu0
    %v1845 = vadd.f32 %v966, %v1844
    %1846 = vdwg.mxu0
    %1847 = vmatprep.subr.bf16.mxu0 %v1316
    %1848 = vmatpush1.bf16.msra.mxu0 %v1315
    %1849 = vmatprep.subr.bf16.mxu0 %v1310
    %1850 = vmatpush1.bf16.msra.mxu0 %v1309
    %1851 = vmatprep.subr.bf16.mxu0 %v1304
    %1852 = vmatpush1.bf16.msra.mxu0 %v1303
    %1853 = vmatprep.subr.bf16.mxu0 %v1298
    %1854 = vmatpush1.bf16.msra.mxu0 %v1297
    %1855 = vmatprep.subr.bf16.mxu0 %v1292
    %1856 = vmatpush1.bf16.msra.mxu0 %v1291
    %1857 = vmatprep.subr.bf16.mxu0 %v1286
    %1858 = vmatpush1.bf16.msra.mxu0 %v1285
    %1859 = vmatprep.subr.bf16.mxu0 %v1280
    %1860 = vmatpush1.bf16.msra.mxu0 %v1279
    %1861 = vmatprep.subr.bf16.mxu0 %v1274
    %1862 = vmatpush1.bf16.msra.mxu0 %v1273
    %1863 = vmatprep.subr.bf16.mxu0 %v1364
    %1864 = vmatpush2.bf16.msra.mxu0 %v1363
    %1865 = vmatprep.subr.bf16.mxu0 %v1358
    %1866 = vmatpush2.bf16.msra.mxu0 %v1357
    %1867 = vmatprep.subr.bf16.mxu0 %v1352
    %1868 = vmatpush2.bf16.msra.mxu0 %v1351
    %1869 = vmatprep.subr.bf16.mxu0 %v1346
    %1870 = vmatpush2.bf16.msra.mxu0 %v1345
    %1871 = vmatprep.subr.bf16.mxu0 %v1340
    %1872 = vmatpush2.bf16.msra.mxu0 %v1339
    %1873 = vmatprep.subr.bf16.mxu0 %v1334
    %1874 = vmatpush2.bf16.msra.mxu0 %v1333
    %1875 = vmatprep.subr.bf16.mxu0 %v1328
    %1876 = vmatpush2.bf16.msra.mxu0 %v1327
    %1877 = vmatprep.subr.bf16.mxu0 %v1322
    %1878 = vmatpush2.bf16.msra.mxu0 %v1321
    %1879 = vmatprep.mubr.bf16.mxu0 %v822
    %1880 = vmatmul.mubr.bf16.gmra.mxu0 %v821
    %v1881 = vpop.f32.mrf.mxu0
    %v1882 = vadd.f32 %v970, %v1881
    %v1883 = vpop.f32.mrf.mxu0
    %v1884 = vadd.f32 %v974, %v1883
    %v1885 = vpop.f32.mrf.mxu0
    %v1886 = vadd.f32 %v970, %v1885
    %v1887 = vpop.f32.mrf.mxu0
    %v1888 = vadd.f32 %v974, %v1887
    %1889 = vmatprep.mubr.bf16.mxu0 %v824
    %1890 = vmatmul.mubr.bf16.gmra.mxu0 %v823
    %v1891 = vpop.f32.mrf.mxu0
    %v1892 = vadd.f32 %v970, %v1891
    %v1893 = vpop.f32.mrf.mxu0
    %v1894 = vadd.f32 %v974, %v1893
    %v1895 = vpop.f32.mrf.mxu0
    %v1896 = vadd.f32 %v970, %v1895
    %v1897 = vpop.f32.mrf.mxu0
    %v1898 = vadd.f32 %v974, %v1897
    %1899 = vmatprep.mubr.bf16.mxu0 %v826
    %1900 = vmatmul.mubr.bf16.gmra.mxu0 %v825
    %v1901 = vpop.f32.mrf.mxu0
    %v1902 = vadd.f32 %v970, %v1901
    %v1903 = vpop.f32.mrf.mxu0
    %v1904 = vadd.f32 %v974, %v1903
    %v1905 = vpop.f32.mrf.mxu0
    %v1906 = vadd.f32 %v970, %v1905
    %v1907 = vpop.f32.mrf.mxu0
    %v1908 = vadd.f32 %v974, %v1907
    %1909 = vmatprep.mubr.bf16.mxu0 %v828
    %1910 = vmatmul.mubr.bf16.gmra.mxu0 %v827
    %v1911 = vpop.f32.mrf.mxu0
    %v1912 = vadd.f32 %v970, %v1911
    %v1913 = vpop.f32.mrf.mxu0
    %v1914 = vadd.f32 %v974, %v1913
    %v1915 = vpop.f32.mrf.mxu0
    %v1916 = vadd.f32 %v970, %v1915
    %v1917 = vpop.f32.mrf.mxu0
    %v1918 = vadd.f32 %v974, %v1917
    %1919 = vmatprep.mubr.bf16.mxu0 %v830
    %1920 = vmatmul.mubr.bf16.gmra.mxu0 %v829
    %v1921 = vpop.f32.mrf.mxu0
    %v1922 = vadd.f32 %v970, %v1921
    %v1923 = vpop.f32.mrf.mxu0
    %v1924 = vadd.f32 %v974, %v1923
    %v1925 = vpop.f32.mrf.mxu0
    %v1926 = vadd.f32 %v970, %v1925
    %v1927 = vpop.f32.mrf.mxu0
    %v1928 = vadd.f32 %v974, %v1927
    %1929 = vmatprep.mubr.bf16.mxu0 %v832
    %1930 = vmatmul.mubr.bf16.gmra.mxu0 %v831
    %v1931 = vpop.f32.mrf.mxu0
    %v1932 = vadd.f32 %v970, %v1931
    %v1933 = vpop.f32.mrf.mxu0
    %v1934 = vadd.f32 %v974, %v1933
    %v1935 = vpop.f32.mrf.mxu0
    %v1936 = vadd.f32 %v970, %v1935
    %v1937 = vpop.f32.mrf.mxu0
    %v1938 = vadd.f32 %v974, %v1937
    %1939 = vmatprep.mubr.bf16.mxu0 %v834
    %1940 = vmatmul.mubr.bf16.gmra.mxu0 %v833
    %v1941 = vpop.f32.mrf.mxu0
    %v1942 = vadd.f32 %v970, %v1941
    %v1943 = vpop.f32.mrf.mxu0
    %v1944 = vadd.f32 %v974, %v1943
    %v1945 = vpop.f32.mrf.mxu0
    %v1946 = vadd.f32 %v970, %v1945
    %v1947 = vpop.f32.mrf.mxu0
    %v1948 = vadd.f32 %v974, %v1947
    %1949 = vmatprep.mubr.bf16.mxu0 %v836
    %1950 = vmatmul.mubr.bf16.gmra.mxu0 %v835
    %v1951 = vpop.f32.mrf.mxu0
    %v1952 = vadd.f32 %v970, %v1951
    %v1953 = vpop.f32.mrf.mxu0
    %v1954 = vadd.f32 %v974, %v1953
    %v1955 = vpop.f32.mrf.mxu0
    %v1956 = vadd.f32 %v970, %v1955
    %v1957 = vpop.f32.mrf.mxu0
    %v1958 = vadd.f32 %v974, %v1957
    %1959 = vmatprep.mubr.bf16.mxu0 %v838
    %1960 = vmatmul.mubr.bf16.gmra.mxu0 %v837
    %v1961 = vpop.f32.mrf.mxu0
    %v1962 = vadd.f32 %v970, %v1961
    %v1963 = vpop.f32.mrf.mxu0
    %v1964 = vadd.f32 %v974, %v1963
    %v1965 = vpop.f32.mrf.mxu0
    %v1966 = vadd.f32 %v970, %v1965
    %v1967 = vpop.f32.mrf.mxu0
    %v1968 = vadd.f32 %v974, %v1967
    %1969 = vmatprep.mubr.bf16.mxu0 %v840
    %1970 = vmatmul.mubr.bf16.gmra.mxu0 %v839
    %v1971 = vpop.f32.mrf.mxu0
    %v1972 = vadd.f32 %v970, %v1971
    %v1973 = vpop.f32.mrf.mxu0
    %v1974 = vadd.f32 %v974, %v1973
    %v1975 = vpop.f32.mrf.mxu0
    %v1976 = vadd.f32 %v970, %v1975
    %v1977 = vpop.f32.mrf.mxu0
    %v1978 = vadd.f32 %v974, %v1977
    %1979 = vmatprep.mubr.bf16.mxu0 %v842
    %1980 = vmatmul.mubr.bf16.gmra.mxu0 %v841
    %v1981 = vpop.f32.mrf.mxu0
    %v1982 = vadd.f32 %v970, %v1981
    %v1983 = vpop.f32.mrf.mxu0
    %v1984 = vadd.f32 %v974, %v1983
    %v1985 = vpop.f32.mrf.mxu0
    %v1986 = vadd.f32 %v970, %v1985
    %v1987 = vpop.f32.mrf.mxu0
    %v1988 = vadd.f32 %v974, %v1987
    %1989 = vmatprep.mubr.bf16.mxu0 %v844
    %1990 = vmatmul.mubr.bf16.gmra.mxu0 %v843
    %v1991 = vpop.f32.mrf.mxu0
    %v1992 = vadd.f32 %v970, %v1991
    %v1993 = vpop.f32.mrf.mxu0
    %v1994 = vadd.f32 %v974, %v1993
    %v1995 = vpop.f32.mrf.mxu0
    %v1996 = vadd.f32 %v970, %v1995
    %v1997 = vpop.f32.mrf.mxu0
    %v1998 = vadd.f32 %v974, %v1997
    %1999 = vmatprep.mubr.bf16.mxu0 %v846
    %2000 = vmatmul.mubr.bf16.gmra.mxu0 %v845
    %v2001 = vpop.f32.mrf.mxu0
    %v2002 = vadd.f32 %v970, %v2001
    %v2003 = vpop.f32.mrf.mxu0
    %v2004 = vadd.f32 %v974, %v2003
    %v2005 = vpop.f32.mrf.mxu0
    %v2006 = vadd.f32 %v970, %v2005
    %v2007 = vpop.f32.mrf.mxu0
    %v2008 = vadd.f32 %v974, %v2007
    %2009 = vmatprep.mubr.bf16.mxu0 %v848
    %2010 = vmatmul.mubr.bf16.gmra.mxu0 %v847
    %v2011 = vpop.f32.mrf.mxu0
    %v2012 = vadd.f32 %v970, %v2011
    %v2013 = vpop.f32.mrf.mxu0
    %v2014 = vadd.f32 %v974, %v2013
    %v2015 = vpop.f32.mrf.mxu0
    %v2016 = vadd.f32 %v970, %v2015
    %v2017 = vpop.f32.mrf.mxu0
    %v2018 = vadd.f32 %v974, %v2017
    %2019 = vmatprep.mubr.bf16.mxu0 %v850
    %2020 = vmatmul.mubr.bf16.gmra.mxu0 %v849
    %v2021 = vpop.f32.mrf.mxu0
    %v2022 = vadd.f32 %v970, %v2021
    %v2023 = vpop.f32.mrf.mxu0
    %v2024 = vadd.f32 %v974, %v2023
    %v2025 = vpop.f32.mrf.mxu0
    %v2026 = vadd.f32 %v970, %v2025
    %v2027 = vpop.f32.mrf.mxu0
    %v2028 = vadd.f32 %v974, %v2027
    %2029 = vmatprep.mubr.bf16.mxu0 %v852
    %2030 = vmatmul.mubr.bf16.gmra.mxu0 %v851
    %v2031 = vpop.f32.mrf.mxu0
    %v2032 = vadd.f32 %v970, %v2031
    %v2033 = vpop.f32.mrf.mxu0
    %v2034 = vadd.f32 %v974, %v2033
    %v2035 = vpop.f32.mrf.mxu0
    %v2036 = vadd.f32 %v970, %v2035
    %v2037 = vpop.f32.mrf.mxu0
    %v2038 = vadd.f32 %v974, %v2037
    %2039 = vdwg.mxu0
    %v2040 = vpack.c.bf16 %v1500, %v1496
    %v2041 = vpack.c.bf16 %v1502, %v1498
    %v2042 = vpack.c.bf16 %v1693, %v1689
    %v2043 = vpack.c.bf16 %v1695, %v1691
    %v2044 = vpack.c.bf16 %v1886, %v1882
    %v2045 = vpack.c.bf16 %v1888, %v1884
    %v2046 = vpack.c.bf16 %v1510, %v1506
    %v2047 = vpack.c.bf16 %v1512, %v1508
    %v2048 = vpack.c.bf16 %v1703, %v1699
    %v2049 = vpack.c.bf16 %v1705, %v1701
    %v2050 = vpack.c.bf16 %v1896, %v1892
    %v2051 = vpack.c.bf16 %v1898, %v1894
    %v2052 = vpack.c.bf16 %v1520, %v1516
    %v2053 = vpack.c.bf16 %v1522, %v1518
    %v2054 = vpack.c.bf16 %v1713, %v1709
    %v2055 = vpack.c.bf16 %v1715, %v1711
    %v2056 = vpack.c.bf16 %v1906, %v1902
    %v2057 = vpack.c.bf16 %v1908, %v1904
    %v2058 = vpack.c.bf16 %v1530, %v1526
    %v2059 = vpack.c.bf16 %v1532, %v1528
    %v2060 = vpack.c.bf16 %v1723, %v1719
    %v2061 = vpack.c.bf16 %v1725, %v1721
    %v2062 = vpack.c.bf16 %v1916, %v1912
    %v2063 = vpack.c.bf16 %v1918, %v1914
    %v2064 = vpack.c.bf16 %v1540, %v1536
    %v2065 = vpack.c.bf16 %v1542, %v1538
    %v2066 = vpack.c.bf16 %v1733, %v1729
    %v2067 = vpack.c.bf16 %v1735, %v1731
    %v2068 = vpack.c.bf16 %v1926, %v1922
    %v2069 = vpack.c.bf16 %v1928, %v1924
    %v2070 = vpack.c.bf16 %v1550, %v1546
    %v2071 = vpack.c.bf16 %v1552, %v1548
    %v2072 = vpack.c.bf16 %v1743, %v1739
    %v2073 = vpack.c.bf16 %v1745, %v1741
    %v2074 = vpack.c.bf16 %v1936, %v1932
    %v2075 = vpack.c.bf16 %v1938, %v1934
    %v2076 = vpack.c.bf16 %v1560, %v1556
    %v2077 = vpack.c.bf16 %v1562, %v1558
    %v2078 = vpack.c.bf16 %v1753, %v1749
    %v2079 = vpack.c.bf16 %v1755, %v1751
    %v2080 = vpack.c.bf16 %v1946, %v1942
    %v2081 = vpack.c.bf16 %v1948, %v1944
    %v2082 = vpack.c.bf16 %v1570, %v1566
    %v2083 = vpack.c.bf16 %v1572, %v1568
    %v2084 = vpack.c.bf16 %v1763, %v1759
    %v2085 = vpack.c.bf16 %v1765, %v1761
    %v2086 = vpack.c.bf16 %v1956, %v1952
    %v2087 = vpack.c.bf16 %v1958, %v1954
    %v2088 = vpack.c.bf16 %v1580, %v1576
    %v2089 = vpack.c.bf16 %v1582, %v1578
    %v2090 = vpack.c.bf16 %v1773, %v1769
    %v2091 = vpack.c.bf16 %v1775, %v1771
    %v2092 = vpack.c.bf16 %v1966, %v1962
    %v2093 = vpack.c.bf16 %v1968, %v1964
    %v2094 = vpack.c.bf16 %v1590, %v1586
    %v2095 = vpack.c.bf16 %v1592, %v1588
    %v2096 = vpack.c.bf16 %v1783, %v1779
    %v2097 = vpack.c.bf16 %v1785, %v1781
    %v2098 = vpack.c.bf16 %v1976, %v1972
    %v2099 = vpack.c.bf16 %v1978, %v1974
    %v2100 = vpack.c.bf16 %v1600, %v1596
    %v2101 = vpack.c.bf16 %v1602, %v1598
    %v2102 = vpack.c.bf16 %v1793, %v1789
    %v2103 = vpack.c.bf16 %v1795, %v1791
    %v2104 = vpack.c.bf16 %v1986, %v1982
    %v2105 = vpack.c.bf16 %v1988, %v1984
    %v2106 = vpack.c.bf16 %v1610, %v1606
    %v2107 = vpack.c.bf16 %v1612, %v1608
    %v2108 = vpack.c.bf16 %v1803, %v1799
    %v2109 = vpack.c.bf16 %v1805, %v1801
    %v2110 = vpack.c.bf16 %v1996, %v1992
    %v2111 = vpack.c.bf16 %v1998, %v1994
    %v2112 = vpack.c.bf16 %v1620, %v1616
    %v2113 = vpack.c.bf16 %v1622, %v1618
    %v2114 = vpack.c.bf16 %v1813, %v1809
    %v2115 = vpack.c.bf16 %v1815, %v1811
    %v2116 = vpack.c.bf16 %v2006, %v2002
    %v2117 = vpack.c.bf16 %v2008, %v2004
    %v2118 = vpack.c.bf16 %v1630, %v1626
    %v2119 = vpack.c.bf16 %v1632, %v1628
    %v2120 = vpack.c.bf16 %v1823, %v1819
    %v2121 = vpack.c.bf16 %v1825, %v1821
    %v2122 = vpack.c.bf16 %v2016, %v2012
    %v2123 = vpack.c.bf16 %v2018, %v2014
    %v2124 = vpack.c.bf16 %v1640, %v1636
    %v2125 = vpack.c.bf16 %v1642, %v1638
    %v2126 = vpack.c.bf16 %v1833, %v1829
    %v2127 = vpack.c.bf16 %v1835, %v1831
    %v2128 = vpack.c.bf16 %v2026, %v2022
    %v2129 = vpack.c.bf16 %v2028, %v2024
    %v2130 = vpack.c.bf16 %v1650, %v1646
    %v2131 = vpack.c.bf16 %v1652, %v1648
    %v2132 = vpack.c.bf16 %v1843, %v1839
    %v2133 = vpack.c.bf16 %v1845, %v1841
    %v2134 = vpack.c.bf16 %v2036, %v2032
    %v2135 = vpack.c.bf16 %v2038, %v2034
    %v2232 = vunpack.c.l.b16 %v2040
    %v2233 = vunpack.c.l.b16 %v2041
    %v2234 = vunpack.c.l.b16 %v2042
    %v2235 = vunpack.c.l.b16 %v2043
    %v2236 = vunpack.c.l.b16 %v2044
    %v2237 = vunpack.c.l.b16 %v2045
    %v2238 = vunpack.c.h.b16 %v2040
    %v2239 = vunpack.c.h.b16 %v2041
    %v2240 = vunpack.c.h.b16 %v2042
    %v2241 = vunpack.c.h.b16 %v2043
    %v2242 = vunpack.c.h.b16 %v2044
    %v2243 = vunpack.c.h.b16 %v2045
    %v2244 = vunpack.c.l.b16 %v2046
    %v2245 = vunpack.c.l.b16 %v2047
    %v2246 = vunpack.c.l.b16 %v2048
    %v2247 = vunpack.c.l.b16 %v2049
    %v2248 = vunpack.c.l.b16 %v2050
    %v2249 = vunpack.c.l.b16 %v2051
    %v2250 = vunpack.c.h.b16 %v2046
    %v2251 = vunpack.c.h.b16 %v2047
    %v2252 = vunpack.c.h.b16 %v2048
    %v2253 = vunpack.c.h.b16 %v2049
    %v2254 = vunpack.c.h.b16 %v2050
    %v2255 = vunpack.c.h.b16 %v2051
    %v2256 = vunpack.c.l.b16 %v2052
    %v2257 = vunpack.c.l.b16 %v2053
    %v2258 = vunpack.c.l.b16 %v2054
    %v2259 = vunpack.c.l.b16 %v2055
    %v2260 = vunpack.c.l.b16 %v2056
    %v2261 = vunpack.c.l.b16 %v2057
    %v2262 = vunpack.c.h.b16 %v2052
    %v2263 = vunpack.c.h.b16 %v2053
    %v2264 = vunpack.c.h.b16 %v2054
    %v2265 = vunpack.c.h.b16 %v2055
    %v2266 = vunpack.c.h.b16 %v2056
    %v2267 = vunpack.c.h.b16 %v2057
    %v2268 = vunpack.c.l.b16 %v2058
    %v2269 = vunpack.c.l.b16 %v2059
    %v2270 = vunpack.c.l.b16 %v2060
    %v2271 = vunpack.c.l.b16 %v2061
    %v2272 = vunpack.c.l.b16 %v2062
    %v2273 = vunpack.c.l.b16 %v2063
    %v2274 = vunpack.c.h.b16 %v2058
    %v2275 = vunpack.c.h.b16 %v2059
    %v2276 = vunpack.c.h.b16 %v2060
    %v2277 = vunpack.c.h.b16 %v2061
    %v2278 = vunpack.c.h.b16 %v2062
    %v2279 = vunpack.c.h.b16 %v2063
    %v2280 = vunpack.c.l.b16 %v2064
    %v2281 = vunpack.c.l.b16 %v2065
    %v2282 = vunpack.c.l.b16 %v2066
    %v2283 = vunpack.c.l.b16 %v2067
    %v2284 = vunpack.c.l.b16 %v2068
    %v2285 = vunpack.c.l.b16 %v2069
    %v2286 = vunpack.c.h.b16 %v2064
    %v2287 = vunpack.c.h.b16 %v2065
    %v2288 = vunpack.c.h.b16 %v2066
    %v2289 = vunpack.c.h.b16 %v2067
    %v2290 = vunpack.c.h.b16 %v2068
    %v2291 = vunpack.c.h.b16 %v2069
    %v2292 = vunpack.c.l.b16 %v2070
    %v2293 = vunpack.c.l.b16 %v2071
    %v2294 = vunpack.c.l.b16 %v2072
    %v2295 = vunpack.c.l.b16 %v2073
    %v2296 = vunpack.c.l.b16 %v2074
    %v2297 = vunpack.c.l.b16 %v2075
    %v2298 = vunpack.c.h.b16 %v2070
    %v2299 = vunpack.c.h.b16 %v2071
    %v2300 = vunpack.c.h.b16 %v2072
    %v2301 = vunpack.c.h.b16 %v2073
    %v2302 = vunpack.c.h.b16 %v2074
    %v2303 = vunpack.c.h.b16 %v2075
    %v2304 = vunpack.c.l.b16 %v2076
    %v2305 = vunpack.c.l.b16 %v2077
    %v2306 = vunpack.c.l.b16 %v2078
    %v2307 = vunpack.c.l.b16 %v2079
    %v2308 = vunpack.c.l.b16 %v2080
    %v2309 = vunpack.c.l.b16 %v2081
    %v2310 = vunpack.c.h.b16 %v2076
    %v2311 = vunpack.c.h.b16 %v2077
    %v2312 = vunpack.c.h.b16 %v2078
    %v2313 = vunpack.c.h.b16 %v2079
    %v2314 = vunpack.c.h.b16 %v2080
    %v2315 = vunpack.c.h.b16 %v2081
    %v2316 = vunpack.c.l.b16 %v2082
    %v2317 = vunpack.c.l.b16 %v2083
    %v2318 = vunpack.c.l.b16 %v2084
    %v2319 = vunpack.c.l.b16 %v2085
    %v2320 = vunpack.c.l.b16 %v2086
    %v2321 = vunpack.c.l.b16 %v2087
    %v2322 = vunpack.c.h.b16 %v2082
    %v2323 = vunpack.c.h.b16 %v2083
    %v2324 = vunpack.c.h.b16 %v2084
    %v2325 = vunpack.c.h.b16 %v2085
    %v2326 = vunpack.c.h.b16 %v2086
    %v2327 = vunpack.c.h.b16 %v2087
    %v2328 = vunpack.c.l.b16 %v2088
    %v2329 = vunpack.c.l.b16 %v2089
    %v2330 = vunpack.c.l.b16 %v2090
    %v2331 = vunpack.c.l.b16 %v2091
    %v2332 = vunpack.c.l.b16 %v2092
    %v2333 = vunpack.c.l.b16 %v2093
    %v2334 = vunpack.c.h.b16 %v2088
    %v2335 = vunpack.c.h.b16 %v2089
    %v2336 = vunpack.c.h.b16 %v2090
    %v2337 = vunpack.c.h.b16 %v2091
    %v2338 = vunpack.c.h.b16 %v2092
    %v2339 = vunpack.c.h.b16 %v2093
    %v2340 = vunpack.c.l.b16 %v2094
    %v2341 = vunpack.c.l.b16 %v2095
    %v2342 = vunpack.c.l.b16 %v2096
    %v2343 = vunpack.c.l.b16 %v2097
    %v2344 = vunpack.c.l.b16 %v2098
    %v2345 = vunpack.c.l.b16 %v2099
    %v2346 = vunpack.c.h.b16 %v2094
    %v2347 = vunpack.c.h.b16 %v2095
    %v2348 = vunpack.c.h.b16 %v2096
    %v2349 = vunpack.c.h.b16 %v2097
    %v2350 = vunpack.c.h.b16 %v2098
    %v2351 = vunpack.c.h.b16 %v2099
    %v2352 = vunpack.c.l.b16 %v2100
    %v2353 = vunpack.c.l.b16 %v2101
    %v2354 = vunpack.c.l.b16 %v2102
    %v2355 = vunpack.c.l.b16 %v2103
    %v2356 = vunpack.c.l.b16 %v2104
    %v2357 = vunpack.c.l.b16 %v2105
    %v2358 = vunpack.c.h.b16 %v2100
    %v2359 = vunpack.c.h.b16 %v2101
    %v2360 = vunpack.c.h.b16 %v2102
    %v2361 = vunpack.c.h.b16 %v2103
    %v2362 = vunpack.c.h.b16 %v2104
    %v2363 = vunpack.c.h.b16 %v2105
    %v2364 = vunpack.c.l.b16 %v2106
    %v2365 = vunpack.c.l.b16 %v2107
    %v2366 = vunpack.c.l.b16 %v2108
    %v2367 = vunpack.c.l.b16 %v2109
    %v2368 = vunpack.c.l.b16 %v2110
    %v2369 = vunpack.c.l.b16 %v2111
    %v2370 = vunpack.c.h.b16 %v2106
    %v2371 = vunpack.c.h.b16 %v2107
    %v2372 = vunpack.c.h.b16 %v2108
    %v2373 = vunpack.c.h.b16 %v2109
    %v2374 = vunpack.c.h.b16 %v2110
    %v2375 = vunpack.c.h.b16 %v2111
    %v2376 = vunpack.c.l.b16 %v2112
    %v2377 = vunpack.c.l.b16 %v2113
    %v2378 = vunpack.c.l.b16 %v2114
    %v2379 = vunpack.c.l.b16 %v2115
    %v2380 = vunpack.c.l.b16 %v2116
    %v2381 = vunpack.c.l.b16 %v2117
    %v2382 = vunpack.c.h.b16 %v2112
    %v2383 = vunpack.c.h.b16 %v2113
    %v2384 = vunpack.c.h.b16 %v2114
    %v2385 = vunpack.c.h.b16 %v2115
    %v2386 = vunpack.c.h.b16 %v2116
    %v2387 = vunpack.c.h.b16 %v2117
    %v2388 = vunpack.c.l.b16 %v2118
    %v2389 = vunpack.c.l.b16 %v2119
    %v2390 = vunpack.c.l.b16 %v2120
    %v2391 = vunpack.c.l.b16 %v2121
    %v2392 = vunpack.c.l.b16 %v2122
    %v2393 = vunpack.c.l.b16 %v2123
    %v2394 = vunpack.c.h.b16 %v2118
    %v2395 = vunpack.c.h.b16 %v2119
    %v2396 = vunpack.c.h.b16 %v2120
    %v2397 = vunpack.c.h.b16 %v2121
    %v2398 = vunpack.c.h.b16 %v2122
    %v2399 = vunpack.c.h.b16 %v2123
    %v2400 = vunpack.c.l.b16 %v2124
    %v2401 = vunpack.c.l.b16 %v2125
    %v2402 = vunpack.c.l.b16 %v2126
    %v2403 = vunpack.c.l.b16 %v2127
    %v2404 = vunpack.c.l.b16 %v2128
    %v2405 = vunpack.c.l.b16 %v2129
    %v2406 = vunpack.c.h.b16 %v2124
    %v2407 = vunpack.c.h.b16 %v2125
    %v2408 = vunpack.c.h.b16 %v2126
    %v2409 = vunpack.c.h.b16 %v2127
    %v2410 = vunpack.c.h.b16 %v2128
    %v2411 = vunpack.c.h.b16 %v2129
    %v2412 = vunpack.c.l.b16 %v2130
    %v2413 = vunpack.c.l.b16 %v2131
    %v2414 = vunpack.c.l.b16 %v2132
    %v2415 = vunpack.c.l.b16 %v2133
    %v2416 = vunpack.c.l.b16 %v2134
    %v2417 = vunpack.c.l.b16 %v2135
    %v2418 = vunpack.c.h.b16 %v2130
    %v2419 = vunpack.c.h.b16 %v2131
    %v2420 = vunpack.c.h.b16 %v2132
    %v2421 = vunpack.c.h.b16 %v2133
    %v2422 = vunpack.c.h.b16 %v2134
    %v2423 = vunpack.c.h.b16 %v2135
    %v2424 = vpack.c.b16 %v2233, %v2232
    %v2425 = vpack.c.b16 %v2235, %v2234
    %v2426 = vpack.c.b16 %v2237, %v2236
    %v2427 = vpack.c.b16 %v2239, %v2238
    %v2428 = vpack.c.b16 %v2241, %v2240
    %v2429 = vpack.c.b16 %v2243, %v2242
    %v2430 = vpack.c.b16 %v2245, %v2244
    %v2431 = vpack.c.b16 %v2247, %v2246
    %v2432 = vpack.c.b16 %v2249, %v2248
    %v2433 = vpack.c.b16 %v2251, %v2250
    %v2434 = vpack.c.b16 %v2253, %v2252
    %v2435 = vpack.c.b16 %v2255, %v2254
    %v2436 = vpack.c.b16 %v2257, %v2256
    %v2437 = vpack.c.b16 %v2259, %v2258
    %v2438 = vpack.c.b16 %v2261, %v2260
    %v2439 = vpack.c.b16 %v2263, %v2262
    %v2440 = vpack.c.b16 %v2265, %v2264
    %v2441 = vpack.c.b16 %v2267, %v2266
    %v2442 = vpack.c.b16 %v2269, %v2268
    %v2443 = vpack.c.b16 %v2271, %v2270
    %v2444 = vpack.c.b16 %v2273, %v2272
    %v2445 = vpack.c.b16 %v2275, %v2274
    %v2446 = vpack.c.b16 %v2277, %v2276
    %v2447 = vpack.c.b16 %v2279, %v2278
    %v2448 = vpack.c.b16 %v2281, %v2280
    %v2449 = vpack.c.b16 %v2283, %v2282
    %v2450 = vpack.c.b16 %v2285, %v2284
    %v2451 = vpack.c.b16 %v2287, %v2286
    %v2452 = vpack.c.b16 %v2289, %v2288
    %v2453 = vpack.c.b16 %v2291, %v2290
    %v2454 = vpack.c.b16 %v2293, %v2292
    %v2455 = vpack.c.b16 %v2295, %v2294
    %v2456 = vpack.c.b16 %v2297, %v2296
    %v2457 = vpack.c.b16 %v2299, %v2298
    %v2458 = vpack.c.b16 %v2301, %v2300
    %v2459 = vpack.c.b16 %v2303, %v2302
    %v2460 = vpack.c.b16 %v2305, %v2304
    %v2461 = vpack.c.b16 %v2307, %v2306
    %v2462 = vpack.c.b16 %v2309, %v2308
    %v2463 = vpack.c.b16 %v2311, %v2310
    %v2464 = vpack.c.b16 %v2313, %v2312
    %v2465 = vpack.c.b16 %v2315, %v2314
    %v2466 = vpack.c.b16 %v2317, %v2316
    %v2467 = vpack.c.b16 %v2319, %v2318
    %v2468 = vpack.c.b16 %v2321, %v2320
    %v2469 = vpack.c.b16 %v2323, %v2322
    %v2470 = vpack.c.b16 %v2325, %v2324
    %v2471 = vpack.c.b16 %v2327, %v2326
    %v2472 = vpack.c.b16 %v2329, %v2328
    %v2473 = vpack.c.b16 %v2331, %v2330
    %v2474 = vpack.c.b16 %v2333, %v2332
    %v2475 = vpack.c.b16 %v2335, %v2334
    %v2476 = vpack.c.b16 %v2337, %v2336
    %v2477 = vpack.c.b16 %v2339, %v2338
    %v2478 = vpack.c.b16 %v2341, %v2340
    %v2479 = vpack.c.b16 %v2343, %v2342
    %v2480 = vpack.c.b16 %v2345, %v2344
    %v2481 = vpack.c.b16 %v2347, %v2346
    %v2482 = vpack.c.b16 %v2349, %v2348
    %v2483 = vpack.c.b16 %v2351, %v2350
    %v2484 = vpack.c.b16 %v2353, %v2352
    %v2485 = vpack.c.b16 %v2355, %v2354
    %v2486 = vpack.c.b16 %v2357, %v2356
    %v2487 = vpack.c.b16 %v2359, %v2358
    %v2488 = vpack.c.b16 %v2361, %v2360
    %v2489 = vpack.c.b16 %v2363, %v2362
    %v2490 = vpack.c.b16 %v2365, %v2364
    %v2491 = vpack.c.b16 %v2367, %v2366
    %v2492 = vpack.c.b16 %v2369, %v2368
    %v2493 = vpack.c.b16 %v2371, %v2370
    %v2494 = vpack.c.b16 %v2373, %v2372
    %v2495 = vpack.c.b16 %v2375, %v2374
    %v2496 = vpack.c.b16 %v2377, %v2376
    %v2497 = vpack.c.b16 %v2379, %v2378
    %v2498 = vpack.c.b16 %v2381, %v2380
    %v2499 = vpack.c.b16 %v2383, %v2382
    %v2500 = vpack.c.b16 %v2385, %v2384
    %v2501 = vpack.c.b16 %v2387, %v2386
    %v2502 = vpack.c.b16 %v2389, %v2388
    %v2503 = vpack.c.b16 %v2391, %v2390
    %v2504 = vpack.c.b16 %v2393, %v2392
    %v2505 = vpack.c.b16 %v2395, %v2394
    %v2506 = vpack.c.b16 %v2397, %v2396
    %v2507 = vpack.c.b16 %v2399, %v2398
    %v2508 = vpack.c.b16 %v2401, %v2400
    %v2509 = vpack.c.b16 %v2403, %v2402
    %v2510 = vpack.c.b16 %v2405, %v2404
    %v2511 = vpack.c.b16 %v2407, %v2406
    %v2512 = vpack.c.b16 %v2409, %v2408
    %v2513 = vpack.c.b16 %v2411, %v2410
    %v2514 = vpack.c.b16 %v2413, %v2412
    %v2515 = vpack.c.b16 %v2415, %v2414
    %v2516 = vpack.c.b16 %v2417, %v2416
    %v2517 = vpack.c.b16 %v2419, %v2418
    %v2518 = vpack.c.b16 %v2421, %v2420
    %v2519 = vpack.c.b16 %v2423, %v2422
    %2616 = vst [vmem:[#allocation8] sm:$0xff] %v2424
    %2617 = vst [vmem:[#allocation8 + $0x8] sm:$0xff] %v2425
    %2618 = vst [vmem:[#allocation8 + $0x10] sm:$0xff] %v2426
    %2619 = vst [vmem:[#allocation8 + $0x18] sm:$0xff] %v2427
    %2620 = vst [vmem:[#allocation8 + $0x20] sm:$0xff] %v2428
    %2621 = vst [vmem:[#allocation8 + $0x28] sm:$0xff] %v2429
    %2622 = vst [vmem:[#allocation8 + $0x30] sm:$0xff] %v2430
    %2623 = vst [vmem:[#allocation8 + $0x38] sm:$0xff] %v2431
    %2624 = vst [vmem:[#allocation8 + $0x40] sm:$0xff] %v2432
    %2625 = vst [vmem:[#allocation8 + $0x48] sm:$0xff] %v2433
    %2626 = vst [vmem:[#allocation8 + $0x50] sm:$0xff] %v2434
    %2627 = vst [vmem:[#allocation8 + $0x58] sm:$0xff] %v2435
    %2628 = vst [vmem:[#allocation8 + $0x60] sm:$0xff] %v2436
    %2629 = vst [vmem:[#allocation8 + $0x68] sm:$0xff] %v2437
    %2630 = vst [vmem:[#allocation8 + $0x70] sm:$0xff] %v2438
    %2631 = vst [vmem:[#allocation8 + $0x78] sm:$0xff] %v2439
    %2632 = vst [vmem:[#allocation8 + $0x80] sm:$0xff] %v2440
    %2633 = vst [vmem:[#allocation8 + $0x88] sm:$0xff] %v2441
    %2634 = vst [vmem:[#allocation8 + $0x90] sm:$0xff] %v2442
    %2635 = vst [vmem:[#allocation8 + $0x98] sm:$0xff] %v2443
    %2636 = vst [vmem:[#allocation8 + $0xa0] sm:$0xff] %v2444
    %2637 = vst [vmem:[#allocation8 + $0xa8] sm:$0xff] %v2445
    %2638 = vst [vmem:[#allocation8 + $0xb0] sm:$0xff] %v2446
    %2639 = vst [vmem:[#allocation8 + $0xb8] sm:$0xff] %v2447
    %2640 = vst [vmem:[#allocation8 + $0xc0] sm:$0xff] %v2448
    %2641 = vst [vmem:[#allocation8 + $0xc8] sm:$0xff] %v2449
    %2642 = vst [vmem:[#allocation8 + $0xd0] sm:$0xff] %v2450
    %2643 = vst [vmem:[#allocation8 + $0xd8] sm:$0xff] %v2451
    %2644 = vst [vmem:[#allocation8 + $0xe0] sm:$0xff] %v2452
    %2645 = vst [vmem:[#allocation8 + $0xe8] sm:$0xff] %v2453
    %2646 = vst [vmem:[#allocation8 + $0xf0] sm:$0xff] %v2454
    %2647 = vst [vmem:[#allocation8 + $0xf8] sm:$0xff] %v2455
    %2648 = vst [vmem:[#allocation8 + $0x100] sm:$0xff] %v2456
    %2649 = vst [vmem:[#allocation8 + $0x108] sm:$0xff] %v2457
    %2650 = vst [vmem:[#allocation8 + $0x110] sm:$0xff] %v2458
    %2651 = vst [vmem:[#allocation8 + $0x118] sm:$0xff] %v2459
    %2652 = vst [vmem:[#allocation8 + $0x120] sm:$0xff] %v2460
    %2653 = vst [vmem:[#allocation8 + $0x128] sm:$0xff] %v2461
    %2654 = vst [vmem:[#allocation8 + $0x130] sm:$0xff] %v2462
    %2655 = vst [vmem:[#allocation8 + $0x138] sm:$0xff] %v2463
    %2656 = vst [vmem:[#allocation8 + $0x140] sm:$0xff] %v2464
    %2657 = vst [vmem:[#allocation8 + $0x148] sm:$0xff] %v2465
    %2658 = vst [vmem:[#allocation8 + $0x150] sm:$0xff] %v2466
    %2659 = vst [vmem:[#allocation8 + $0x158] sm:$0xff] %v2467
    %2660 = vst [vmem:[#allocation8 + $0x160] sm:$0xff] %v2468
    %2661 = vst [vmem:[#allocation8 + $0x168] sm:$0xff] %v2469
    %2662 = vst [vmem:[#allocation8 + $0x170] sm:$0xff] %v2470
    %2663 = vst [vmem:[#allocation8 + $0x178] sm:$0xff] %v2471
    %2664 = vst [vmem:[#allocation8 + $0x180] sm:$0xff] %v2472
    %2665 = vst [vmem:[#allocation8 + $0x188] sm:$0xff] %v2473
    %2666 = vst [vmem:[#allocation8 + $0x190] sm:$0xff] %v2474
    %2667 = vst [vmem:[#allocation8 + $0x198] sm:$0xff] %v2475
    %2668 = vst [vmem:[#allocation8 + $0x1a0] sm:$0xff] %v2476
    %2669 = vst [vmem:[#allocation8 + $0x1a8] sm:$0xff] %v2477
    %2670 = vst [vmem:[#allocation8 + $0x1b0] sm:$0xff] %v2478
    %2671 = vst [vmem:[#allocation8 + $0x1b8] sm:$0xff] %v2479
    %2672 = vst [vmem:[#allocation8 + $0x1c0] sm:$0xff] %v2480
    %2673 = vst [vmem:[#allocation8 + $0x1c8] sm:$0xff] %v2481
    %2674 = vst [vmem:[#allocation8 + $0x1d0] sm:$0xff] %v2482
    %2675 = vst [vmem:[#allocation8 + $0x1d8] sm:$0xff] %v2483
    %2676 = vst [vmem:[#allocation8 + $0x1e0] sm:$0xff] %v2484
    %2677 = vst [vmem:[#allocation8 + $0x1e8] sm:$0xff] %v2485
    %2678 = vst [vmem:[#allocation8 + $0x1f0] sm:$0xff] %v2486
    %2679 = vst [vmem:[#allocation8 + $0x1f8] sm:$0xff] %v2487
    %2680 = vst [vmem:[#allocation8 + $0x200] sm:$0xff] %v2488
    %2681 = vst [vmem:[#allocation8 + $0x208] sm:$0xff] %v2489
    %2682 = vst [vmem:[#allocation8 + $0x210] sm:$0xff] %v2490
    %2683 = vst [vmem:[#allocation8 + $0x218] sm:$0xff] %v2491
    %2684 = vst [vmem:[#allocation8 + $0x220] sm:$0xff] %v2492
    %2685 = vst [vmem:[#allocation8 + $0x228] sm:$0xff] %v2493
    %2686 = vst [vmem:[#allocation8 + $0x230] sm:$0xff] %v2494
    %2687 = vst [vmem:[#allocation8 + $0x238] sm:$0xff] %v2495
    %2688 = vst [vmem:[#allocation8 + $0x240] sm:$0xff] %v2496
    %2689 = vst [vmem:[#allocation8 + $0x248] sm:$0xff] %v2497
    %2690 = vst [vmem:[#allocation8 + $0x250] sm:$0xff] %v2498
    %2691 = vst [vmem:[#allocation8 + $0x258] sm:$0xff] %v2499
    %2692 = vst [vmem:[#allocation8 + $0x260] sm:$0xff] %v2500
    %2693 = vst [vmem:[#allocation8 + $0x268] sm:$0xff] %v2501
    %2694 = vst [vmem:[#allocation8 + $0x270] sm:$0xff] %v2502
    %2695 = vst [vmem:[#allocation8 + $0x278] sm:$0xff] %v2503
    %2696 = vst [vmem:[#allocation8 + $0x280] sm:$0xff] %v2504
    %2697 = vst [vmem:[#allocation8 + $0x288] sm:$0xff] %v2505
    %2698 = vst [vmem:[#allocation8 + $0x290] sm:$0xff] %v2506
    %2699 = vst [vmem:[#allocation8 + $0x298] sm:$0xff] %v2507
    %2700 = vst [vmem:[#allocation8 + $0x2a0] sm:$0xff] %v2508
    %2701 = vst [vmem:[#allocation8 + $0x2a8] sm:$0xff] %v2509
    %2702 = vst [vmem:[#allocation8 + $0x2b0] sm:$0xff] %v2510
    %2703 = vst [vmem:[#allocation8 + $0x2b8] sm:$0xff] %v2511
    %2704 = vst [vmem:[#allocation8 + $0x2c0] sm:$0xff] %v2512
    %2705 = vst [vmem:[#allocation8 + $0x2c8] sm:$0xff] %v2513
    %2706 = vst [vmem:[#allocation8 + $0x2d0] sm:$0xff] %v2514
    %2707 = vst [vmem:[#allocation8 + $0x2d8] sm:$0xff] %v2515
    %2708 = vst [vmem:[#allocation8 + $0x2e0] sm:$0xff] %v2516
    %2709 = vst [vmem:[#allocation8 + $0x2e8] sm:$0xff] %v2517
    %2710 = vst [vmem:[#allocation8 + $0x2f0] sm:$0xff] %v2518
    %2711 = vst [vmem:[#allocation8 + $0x2f8] sm:$0xff] %v2519
    // Predicated region
    $region34: #{tpu_custom_call.1} parent=1 // pred_check
      _
    $region35: #{tpu_custom_call.1} parent=1 // pred_check_branch
      %2713 = sbr.rel (0) target = $region37
    $region36: #{tpu_custom_call.1} parent=1 // pred_region
      %s2715 = ssub.s32 12288, 12288
      %2716 = vsyncadd [#allocation4], %s2715
      %s2717 = sshll.u32 [#allocation8], 4
      %s2718 = int_to_ptr.vmem [resolvable:$true] %s2717
      %2723 = dma.vmem_to_hbm [thread:$0]  %s2718, 12288, %s5, [#allocation4], 384, 384, 24
    $region37: #{tpu_custom_call.1} parent=1 // pred_fallthru
      _
    // Predicated region
    $region38: #{tpu_custom_call.1} parent=1 // pred_check
      _
    $region39: #{tpu_custom_call.1} parent=1 // pred_check_branch
      %2725 = sbr.rel (0) target = $region41
    $region40: #{tpu_custom_call.1} parent=1 // pred_region
      %2726 = dma.done [#allocation4], 12288
    $region41: #{tpu_custom_call.1} parent=1 // pred_fallthru
      _
    %2727 = vsyncpa [#allocation3], 1
    %2728 = vsyncpa [#allocation6], 1
    %2729 = vsyncpa [#allocation4], 1

</llo_original>
